<compile_context>
chip_gen: v7x
topology: tpu7x:2x2x1
jax: 0.10.0
libtpu: 0.0.40
codegen_flags: <defaults>
</compile_context>

<pallas_src>
import math
import numpy as np
import jax
import jax.numpy as jnp
from jax import lax
from jax.experimental import pallas as pl
from jax.experimental.pallas import tpu as pltpu

# ----------------------------- problem setup --------------------------------
R = 8                          # space_order = 16  -> stencil radius 8
NZI, NXI = 64, 64              # interior (physical) grid
NP = 128                       # padded, vreg/MXU-friendly grid edge (>= NZI+2R)
NT = 128                       # time steps
NREC = NXI                     # one receiver per interior x column
H = 10.0                       # grid spacing [m]
DT = 1.0e-3                    # time step [s]  (well inside CFL for v<=2130 m/s)
F0 = 15.0                      # Ricker peak frequency [Hz]
SRC_ZI, SRC_XI = 2, NXI // 2   # source position (interior coordinates)
REC_ZI = 2                     # receiver depth (interior coordinates)
REC_ROW = R + REC_ZI           # receiver row in padded coordinates
SRC_ROW = R + SRC_ZI           # source row in padded coordinates
SRC_T0 = (SRC_ROW // 8) * 8    # first row of the (8,128) sublane tile w/ source

DT2 = DT * DT
INV_H2 = 1.0 / (H * H)


def _fd_second_deriv_coeffs(radius):
    """Central FD coefficients for d2/dx2 of order 2*radius (h=1)."""
    c = [0.0] * (radius + 1)
    for k in range(1, radius + 1):
        c[k] = (2.0 * (-1.0) ** (k + 1) * math.factorial(radius) ** 2
                / (k * k * math.factorial(radius - k) * math.factorial(radius + k)))
    c[0] = -2.0 * sum(c[1:])
    return c


LAP_C = _fd_second_deriv_coeffs(R)


def _ricker(nt, dt, f0):
    t = np.arange(nt, dtype=np.float64) * dt
    t0 = 1.0 / f0
    a = (np.pi * f0 * (t - t0)) ** 2
    return ((1.0 - 2.0 * a) * np.exp(-a)).astype(np.float32)


def _interior_m():
    # deterministic background model: v = 1500 + 10*z [m/s], m = 1/v^2
    z = np.arange(NZI, dtype=np.float64)
    vp = 1500.0 + 10.0 * z
    m = (1.0 / vp) ** 2
    return np.broadcast_to(m[:, None], (NZI, NXI)).copy()


def _deriv_matrix(n):
    """1-D 16th-order second-derivative operator (includes 1/h^2) as a banded,
    symmetric matrix, so lap(W) = D @ W + W @ D (pure MXU matmuls).  For
    interior points the band never gets truncated, matching the shifted-slice
    stencil exactly."""
    d = np.zeros((n, n), dtype=np.float64)
    for k in range(-R, R + 1):
        d += LAP_C[abs(k)] * np.eye(n, k=k)
    return d * INV_H2


M_INT = _interior_m()                                   # (NZI, NXI) squared slowness
WAVELET = _ricker(NT, DT, F0)                           # (NT,) source wavelet
D_Z = _deriv_matrix(NP).astype(np.float32)              # (NP, NP) 1-D d2 operator

# interior mask * dt^2 / m over the padded grid (shared by the u and du halves).
_upd = np.zeros((NP, NP), dtype=np.float64)
_upd[R:R + NZI, R:R + NXI] = DT2 / M_INT
UPD = _upd.astype(np.float32)                           # (NP, NP)

# Point-source injection weights (Devito: src.inject(expr=src*dt^2/m)) reduced
# to the single (8, NP) sublane tile containing the source row.
_inj = np.zeros((8, NP), dtype=np.float64)
_inj[SRC_ROW - SRC_T0, R + SRC_XI] = DT2 / M_INT[SRC_ZI, SRC_XI]
INJ_TILE = _inj.astype(np.float32)                      # (8, NP)


# ------------------------------ Pallas kernel --------------------------------
def born_kernel(wav_ref, dz_ref, upd_ref, inj_ref, born_ref,
                d_ref, wa_ref, wb_ref, rec_ref):
    """Full Born forward modeling; the entire NT-step time loop runs in one
    kernel invocation.  wa_ref / wb_ref are two statically-addressed VMEM
    buffers holding the two leapfrog time levels of the combined field [u | du];
    the 'next' level always overwrites the old 'prev' buffer (no rotate copies,
    no dynamic parity indexing).  rec_ref buffers 8 receiver rows so the output
    is written with aligned full-tile stores only."""
    # u(-1) = u(0) = du(-1) = du(0) = 0
    wa_ref[...] = jnp.zeros_like(wa_ref)
    wb_ref[...] = jnp.zeros_like(wb_ref)

    def half_step(t, cur_ref, nxt_ref):
        # --- receiver sampling of the *current* scattered field: d[t] = du[t]
        # (matches Devito's rec.interpolate at the current time index); buffered
        # into the (8,128) scratch, flushed every 8 steps in two_steps().
        rec_ref[pl.ds(t & 7, 1), :] = cur_ref[REC_ROW:REC_ROW + 1, NP:2 * NP]

        # --- 16th-order Laplacian of [u | du] on the MXU: bf16 operands,
        # f32 accumulate (native MXU rate; state / updates stay f32).
        # Constants are read in-loop (not hoisted) to keep vreg live ranges
        # small; the vld slots hide these loads under the matmuls.
        dzb = dz_ref[...]                                         # (NP, NP) bf16
        w_b = cur_ref[...].astype(jnp.bfloat16)                   # (NP, 2NP) bf16
        lap_z = jnp.dot(dzb, w_b, preferred_element_type=jnp.float32)      # z-deriv, both halves
        lap_xu = jnp.dot(w_b[:, :NP], dzb, preferred_element_type=jnp.float32)   # x-deriv, u half
        lap_xd = jnp.dot(w_b[:, NP:], dzb, preferred_element_type=jnp.float32)   # x-deriv, du half

        upd = upd_ref[...]                                        # mask * dt^2 / m

        # u half: excite = dt^2/m * lap(u); it is zero outside the interior, so
        # the zero-Dirichlet halo is preserved exactly.
        exc_u = upd * (lap_z[:, :NP] + lap_xu)                    # dt^2 * u_tt (pre-source)
        nxt_ref[:, 0:NP] = 2.0 * cur_ref[:, 0:NP] - nxt_ref[:, 0:NP] + exc_u

        # du half: leapfrog + Born source -dm*u_tt applied directly on the lane
        # half (born_ref = mask * dm / m, half width; no full-width roll).
        exc_d = upd * (lap_z[:, NP:] + lap_xd)
        nxt_ref[:, NP:2 * NP] = (2.0 * cur_ref[:, NP:2 * NP] - nxt_ref[:, NP:2 * NP]
                                 + exc_d - born_ref[...] * exc_u)

        # --- point-source injection confined to the single (8,128) sublane tile
        # containing the source row: u gets +wav*dt^2/m, and du gets the matching
        # Born contribution so the Born source sees the full dt^2*u_tt (identical
        # semantics to the previous full-field broadcast, ~64 fewer VALU ops/step).
        inj_add = wav_ref[t] * inj_ref[...]                       # (8, NP)
        nxt_ref[SRC_T0:SRC_T0 + 8, 0:NP] = (
            nxt_ref[SRC_T0:SRC_T0 + 8, 0:NP] + inj_add)
        nxt_ref[SRC_T0:SRC_T0 + 8, NP:2 * NP] = (
            nxt_ref[SRC_T0:SRC_T0 + 8, NP:2 * NP]
            - born_ref[SRC_T0:SRC_T0 + 8, :] * inj_add)

    def two_steps(i, carry):
        t0 = 2 * i
        # invariant at loop entry: wa holds w[t0], wb holds w[t0-1]
        half_step(t0, wa_ref, wb_ref)        # writes w[t0+1] into wb
        half_step(t0 + 1, wb_ref, wa_ref)    # writes w[t0+2] into wa

        # Flush 8 buffered receiver rows with one aligned full-tile store.
        @pl.when((i & 3) == 3)
        def _():
            base = pl.multiple_of(2 * i - 6, 8)
            d_ref[pl.ds(base, 8), :] = rec_ref[...]

        return carry

    lax.fori_loop(0, NT // 2, two_steps, 0)


# ------------------------------ wrapper --------------------------------------
@jax.jit
def forward_born_layer(x):
    """x: (1, 1, NZI, NXI) float32 perturbation (NCHW-style, batch=channel=1).
    Returns the Born-modeled shot record of shape (NT, NREC) float32."""
    dm = x[0, 0].astype(jnp.float32)
    # mask * dm / m on the padded grid (du lane-half only, so half width).
    born = jnp.zeros((NP, NP), jnp.float32)
    born = born.at[R:R + NZI, R:R + NXI].set(dm / jnp.asarray(M_INT, jnp.float32))

    vmem = pl.BlockSpec(memory_space=pltpu.MemorySpace.VMEM)
    smem = pl.BlockSpec(memory_space=pltpu.MemorySpace.SMEM)
    d_full = pl.pallas_call(
        born_kernel,
        out_shape=jax.ShapeDtypeStruct((NT, NP), jnp.float32),   # lane-dense output
        in_specs=[
            smem,   # wavelet (NT,)              scalar reads
            vmem,   # D_Z (bf16)                 1-D second-derivative operator
            vmem,   # UPD                        mask * dt^2 / m
            vmem,   # INJ_TILE (8, NP)           source-injection tile
            vmem,   # born (NP, NP)              mask * dm / m  (du half)
        ],
        out_specs=vmem,
        scratch_shapes=[
            pltpu.VMEM((NP, 2 * NP), jnp.float32),   # leapfrog level A  [u | du]
            pltpu.VMEM((NP, 2 * NP), jnp.float32),   # leapfrog level B  [u | du]
            pltpu.VMEM((8, NP), jnp.float32),        # receiver-row batch buffer
        ],
    )(jnp.asarray(WAVELET),
      jnp.asarray(D_Z, dtype=jnp.bfloat16),
      jnp.asarray(UPD),
      jnp.asarray(INJ_TILE),
      born)

    # Receiver gather (interior x columns) done as a cheap slice in the wrapper.
    return d_full[:, R:R + NREC]


# ------------------------------ main -----------------------------------------
if __name__ == "__main__":
    key = jax.random.PRNGKey(0)
    x = 1e-3 * jax.random.normal(key, (1, 1, NZI, NXI), dtype=jnp.float32)

    d = forward_born_layer(x)
    d = jax.block_until_ready(d)

    assert d.shape == (NT, NREC), d.shape
    assert d.dtype == jnp.float32
    assert bool(jnp.all(jnp.isfinite(d)))
    print("KERNEL_OK")
</pallas_src>

<mosaic_0001>
module attributes {stable_mosaic.version = 11 : i64} {
  func.func @born_kernel(%arg0: memref<128xf32, #tpu.memory_space<smem>>, %arg1: memref<128x128xbf16, #tpu.memory_space<vmem>>, %arg2: memref<128x128xf32, #tpu.memory_space<vmem>>, %arg3: memref<8x128xf32, #tpu.memory_space<vmem>>, %arg4: memref<128x128xf32, #tpu.memory_space<vmem>>, %arg5: memref<128x128xf32, #tpu.memory_space<vmem>>, %arg6: memref<128x256xf32, #tpu.memory_space<vmem>>, %arg7: memref<128x256xf32, #tpu.memory_space<vmem>>, %arg8: memref<8x128xf32, #tpu.memory_space<vmem>>) attributes {dimension_semantics = [], scalar_prefetch = 0 : i64, scratch_operands = 3 : i64, tpu.core_type = #tpu.core_type<tc>} {
    %cst = arith.constant 0.000000e+00 : f32
    %0 = vector.broadcast %cst : f32 to vector<128x256xf32>
    %c0 = arith.constant 0 : index
    %c0_0 = arith.constant 0 : index
    %1 = vector.load %arg6[%c0, %c0_0] : memref<128x256xf32, #tpu.memory_space<vmem>>, vector<128x256xf32>
    tpu.vector_store %arg6[%c0, %c0_0], %0 {strides = array<i32>} : memref<128x256xf32, #tpu.memory_space<vmem>>, vector<128x256xf32>,
    %cst_1 = arith.constant 0.000000e+00 : f32
    %2 = vector.broadcast %cst_1 : f32 to vector<128x256xf32>
    %c0_2 = arith.constant 0 : index
    %c0_3 = arith.constant 0 : index
    %3 = vector.load %arg7[%c0_2, %c0_3] : memref<128x256xf32, #tpu.memory_space<vmem>>, vector<128x256xf32>
    tpu.vector_store %arg7[%c0_2, %c0_3], %2 {strides = array<i32>} : memref<128x256xf32, #tpu.memory_space<vmem>>, vector<128x256xf32>,
    %c0_i32 = arith.constant 0 : i32
    %c64_i32 = arith.constant 64 : i32
    %4 = arith.addi %c0_i32, %c64_i32 : i32
    %c1_i32 = arith.constant 1 : i32
    scf.for %arg9 = %c0_i32 to %4 step %c1_i32  : i32 {
      %c2_i32 = arith.constant 2 : i32
      %5 = arith.muli %c2_i32, %arg9 : i32
      %c10 = arith.constant 10 : index
      %c128 = arith.constant 128 : index
      %6 = vector.load %arg6[%c10, %c128] : memref<128x256xf32, #tpu.memory_space<vmem>>, vector<1x128xf32>
      %c7_i32 = arith.constant 7 : i32
      %7 = arith.andi %5, %c7_i32 : i32
      %8 = arith.index_cast %7 : i32 to index
      %c0_5 = arith.constant 0 : index
      %9 = vector.load %arg8[%8, %c0_5] : memref<8x128xf32, #tpu.memory_space<vmem>>, vector<1x128xf32>
      tpu.vector_store %arg8[%8, %c0_5], %6 {strides = array<i32>} : memref<8x128xf32, #tpu.memory_space<vmem>>, vector<1x128xf32>,
      %c0_6 = arith.constant 0 : index
      %c0_7 = arith.constant 0 : index
      %10 = vector.load %arg1[%c0_6, %c0_7] : memref<128x128xbf16, #tpu.memory_space<vmem>>, vector<128x128xbf16>
      %c0_8 = arith.constant 0 : index
      %c0_9 = arith.constant 0 : index
      %11 = vector.load %arg6[%c0_8, %c0_9] : memref<128x256xf32, #tpu.memory_space<vmem>>, vector<128x256xf32>
      %12 = arith.truncf %11 : vector<128x256xf32> to vector<128x256xbf16>
      %cst_10 = arith.constant dense<0.000000e+00> : vector<128x256xf32>
      %13 = tpu.matmul %10, %12, %cst_10 {dimension_numbers = #tpu.dot_dimension_numbers<[1], [0], [0], [1], [0, 0, 1, 1], [], []>} : vector<128x128xbf16>, vector<128x256xbf16>, vector<128x256xf32> -> vector<128x256xf32>
      %14 = vector.extract_strided_slice %12 {offsets = [0, 0], sizes = [128, 128], strides = [1, 1]} : vector<128x256xbf16> to vector<128x128xbf16>
      %cst_11 = arith.constant dense<0.000000e+00> : vector<128x128xf32>
      %15 = tpu.matmul %14, %10, %cst_11 {dimension_numbers = #tpu.dot_dimension_numbers<[1], [0], [0], [1], [0, 0, 1, 1], [], []>} : vector<128x128xbf16>, vector<128x128xbf16>, vector<128x128xf32> -> vector<128x128xf32>
      %16 = vector.extract_strided_slice %12 {offsets = [0, 128], sizes = [128, 128], strides = [1, 1]} : vector<128x256xbf16> to vector<128x128xbf16>
      %cst_12 = arith.constant dense<0.000000e+00> : vector<128x128xf32>
      %17 = tpu.matmul %16, %10, %cst_12 {dimension_numbers = #tpu.dot_dimension_numbers<[1], [0], [0], [1], [0, 0, 1, 1], [], []>} : vector<128x128xbf16>, vector<128x128xbf16>, vector<128x128xf32> -> vector<128x128xf32>
      %c0_13 = arith.constant 0 : index
      %c0_14 = arith.constant 0 : index
      %18 = vector.load %arg2[%c0_13, %c0_14] : memref<128x128xf32, #tpu.memory_space<vmem>>, vector<128x128xf32>
      %19 = vector.extract_strided_slice %13 {offsets = [0, 0], sizes = [128, 128], strides = [1, 1]} : vector<128x256xf32> to vector<128x128xf32>
      %20 = arith.addf %19, %15 : vector<128x128xf32>
      %21 = arith.mulf %18, %20 : vector<128x128xf32>
      %c0_15 = arith.constant 0 : index
      %c0_16 = arith.constant 0 : index
      %22 = vector.load %arg6[%c0_15, %c0_16] : memref<128x256xf32, #tpu.memory_space<vmem>>, vector<128x128xf32>
      %cst_17 = arith.constant 2.000000e+00 : f32
      %23 = vector.broadcast %cst_17 : f32 to vector<128x128xf32>
      %24 = arith.mulf %23, %22 : vector<128x128xf32>
      %c0_18 = arith.constant 0 : index
      %c0_19 = arith.constant 0 : index
      %25 = vector.load %arg7[%c0_18, %c0_19] : memref<128x256xf32, #tpu.memory_space<vmem>>, vector<128x128xf32>
      %26 = arith.subf %24, %25 : vector<128x128xf32>
      %27 = arith.addf %26, %21 : vector<128x128xf32>
      %c0_20 = arith.constant 0 : index
      %c0_21 = arith.constant 0 : index
      %28 = vector.load %arg7[%c0_20, %c0_21] : memref<128x256xf32, #tpu.memory_space<vmem>>, vector<128x128xf32>
      tpu.vector_store %arg7[%c0_20, %c0_21], %27 {strides = array<i32>} : memref<128x256xf32, #tpu.memory_space<vmem>>, vector<128x128xf32>,
      %29 = vector.extract_strided_slice %13 {offsets = [0, 128], sizes = [128, 128], strides = [1, 1]} : vector<128x256xf32> to vector<128x128xf32>
      %30 = arith.addf %29, %17 : vector<128x128xf32>
      %31 = arith.mulf %18, %30 : vector<128x128xf32>
      %c0_22 = arith.constant 0 : index
      %c128_23 = arith.constant 128 : index
      %32 = vector.load %arg6[%c0_22, %c128_23] : memref<128x256xf32, #tpu.memory_space<vmem>>, vector<128x128xf32>
      %cst_24 = arith.constant 2.000000e+00 : f32
      %33 = vector.broadcast %cst_24 : f32 to vector<128x128xf32>
      %34 = arith.mulf %33, %32 : vector<128x128xf32>
      %c0_25 = arith.constant 0 : index
      %c128_26 = arith.constant 128 : index
      %35 = vector.load %arg7[%c0_25, %c128_26] : memref<128x256xf32, #tpu.memory_space<vmem>>, vector<128x128xf32>
      %36 = arith.subf %34, %35 : vector<128x128xf32>
      %37 = arith.addf %36, %31 : vector<128x128xf32>
      %c0_27 = arith.constant 0 : index
      %c0_28 = arith.constant 0 : index
      %38 = vector.load %arg4[%c0_27, %c0_28] : memref<128x128xf32, #tpu.memory_space<vmem>>, vector<128x128xf32>
      %39 = arith.mulf %38, %21 : vector<128x128xf32>
      %40 = arith.subf %37, %39 : vector<128x128xf32>
      %c0_29 = arith.constant 0 : index
      %c128_30 = arith.constant 128 : index
      %41 = vector.load %arg7[%c0_29, %c128_30] : memref<128x256xf32, #tpu.memory_space<vmem>>, vector<128x128xf32>
      tpu.vector_store %arg7[%c0_29, %c128_30], %40 {strides = array<i32>} : memref<128x256xf32, #tpu.memory_space<vmem>>, vector<128x128xf32>,
      %42 = arith.index_cast %5 : i32 to index
      %43 = memref.load %arg0[%42] : memref<128xf32, #tpu.memory_space<smem>>
      %c0_31 = arith.constant 0 : index
      %c0_32 = arith.constant 0 : index
      %44 = vector.load %arg3[%c0_31, %c0_32] : memref<8x128xf32, #tpu.memory_space<vmem>>, vector<8x128xf32>
      %45 = vector.broadcast %43 : f32 to vector<8x128xf32>
      %46 = arith.mulf %45, %44 : vector<8x128xf32>
      %c8 = arith.constant 8 : index
      %c0_33 = arith.constant 0 : index
      %47 = vector.load %arg7[%c8, %c0_33] : memref<128x256xf32, #tpu.memory_space<vmem>>, vector<8x128xf32>
      %48 = arith.addf %47, %46 : vector<8x128xf32>
      %c8_34 = arith.constant 8 : index
      %c0_35 = arith.constant 0 : index
      %49 = vector.load %arg7[%c8_34, %c0_35] : memref<128x256xf32, #tpu.memory_space<vmem>>, vector<8x128xf32>
      tpu.vector_store %arg7[%c8_34, %c0_35], %48 {strides = array<i32>} : memref<128x256xf32, #tpu.memory_space<vmem>>, vector<8x128xf32>,
      %c8_36 = arith.constant 8 : index
      %c128_37 = arith.constant 128 : index
      %50 = vector.load %arg7[%c8_36, %c128_37] : memref<128x256xf32, #tpu.memory_space<vmem>>, vector<8x128xf32>
      %c8_38 = arith.constant 8 : index
      %c0_39 = arith.constant 0 : index
      %51 = vector.load %arg4[%c8_38, %c0_39] : memref<128x128xf32, #tpu.memory_space<vmem>>, vector<8x128xf32>
      %52 = arith.mulf %51, %46 : vector<8x128xf32>
      %53 = arith.subf %50, %52 : vector<8x128xf32>
      %c8_40 = arith.constant 8 : index
      %c128_41 = arith.constant 128 : index
      %54 = vector.load %arg7[%c8_40, %c128_41] : memref<128x256xf32, #tpu.memory_space<vmem>>, vector<8x128xf32>
      tpu.vector_store %arg7[%c8_40, %c128_41], %53 {strides = array<i32>} : memref<128x256xf32, #tpu.memory_space<vmem>>, vector<8x128xf32>,
      %c1_i32_42 = arith.constant 1 : i32
      %55 = arith.addi %5, %c1_i32_42 : i32
      %c10_43 = arith.constant 10 : index
      %c128_44 = arith.constant 128 : index
      %56 = vector.load %arg7[%c10_43, %c128_44] : memref<128x256xf32, #tpu.memory_space<vmem>>, vector<1x128xf32>
      %c7_i32_45 = arith.constant 7 : i32
      %57 = arith.andi %55, %c7_i32_45 : i32
      %58 = arith.index_cast %57 : i32 to index
      %c0_46 = arith.constant 0 : index
      %59 = vector.load %arg8[%58, %c0_46] : memref<8x128xf32, #tpu.memory_space<vmem>>, vector<1x128xf32>
      tpu.vector_store %arg8[%58, %c0_46], %56 {strides = array<i32>} : memref<8x128xf32, #tpu.memory_space<vmem>>, vector<1x128xf32>,
      %c0_47 = arith.constant 0 : index
      %c0_48 = arith.constant 0 : index
      %60 = vector.load %arg1[%c0_47, %c0_48] : memref<128x128xbf16, #tpu.memory_space<vmem>>, vector<128x128xbf16>
      %c0_49 = arith.constant 0 : index
      %c0_50 = arith.constant 0 : index
      %61 = vector.load %arg7[%c0_49, %c0_50] : memref<128x256xf32, #tpu.memory_space<vmem>>, vector<128x256xf32>
      %62 = arith.truncf %61 : vector<128x256xf32> to vector<128x256xbf16>
      %cst_51 = arith.constant dense<0.000000e+00> : vector<128x256xf32>
      %63 = tpu.matmul %60, %62, %cst_51 {dimension_numbers = #tpu.dot_dimension_numbers<[1], [0], [0], [1], [0, 0, 1, 1], [], []>} : vector<128x128xbf16>, vector<128x256xbf16>, vector<128x256xf32> -> vector<128x256xf32>
      %64 = vector.extract_strided_slice %62 {offsets = [0, 0], sizes = [128, 128], strides = [1, 1]} : vector<128x256xbf16> to vector<128x128xbf16>
      %cst_52 = arith.constant dense<0.000000e+00> : vector<128x128xf32>
      %65 = tpu.matmul %64, %60, %cst_52 {dimension_numbers = #tpu.dot_dimension_numbers<[1], [0], [0], [1], [0, 0, 1, 1], [], []>} : vector<128x128xbf16>, vector<128x128xbf16>, vector<128x128xf32> -> vector<128x128xf32>
      %66 = vector.extract_strided_slice %62 {offsets = [0, 128], sizes = [128, 128], strides = [1, 1]} : vector<128x256xbf16> to vector<128x128xbf16>
      %cst_53 = arith.constant dense<0.000000e+00> : vector<128x128xf32>
      %67 = tpu.matmul %66, %60, %cst_53 {dimension_numbers = #tpu.dot_dimension_numbers<[1], [0], [0], [1], [0, 0, 1, 1], [], []>} : vector<128x128xbf16>, vector<128x128xbf16>, vector<128x128xf32> -> vector<128x128xf32>
      %c0_54 = arith.constant 0 : index
      %c0_55 = arith.constant 0 : index
      %68 = vector.load %arg2[%c0_54, %c0_55] : memref<128x128xf32, #tpu.memory_space<vmem>>, vector<128x128xf32>
      %69 = vector.extract_strided_slice %63 {offsets = [0, 0], sizes = [128, 128], strides = [1, 1]} : vector<128x256xf32> to vector<128x128xf32>
      %70 = arith.addf %69, %65 : vector<128x128xf32>
      %71 = arith.mulf %68, %70 : vector<128x128xf32>
      %c0_56 = arith.constant 0 : index
      %c0_57 = arith.constant 0 : index
      %72 = vector.load %arg7[%c0_56, %c0_57] : memref<128x256xf32, #tpu.memory_space<vmem>>, vector<128x128xf32>
      %cst_58 = arith.constant 2.000000e+00 : f32
      %73 = vector.broadcast %cst_58 : f32 to vector<128x128xf32>
      %74 = arith.mulf %73, %72 : vector<128x128xf32>
      %c0_59 = arith.constant 0 : index
      %c0_60 = arith.constant 0 : index
      %75 = vector.load %arg6[%c0_59, %c0_60] : memref<128x256xf32, #tpu.memory_space<vmem>>, vector<128x128xf32>
      %76 = arith.subf %74, %75 : vector<128x128xf32>
      %77 = arith.addf %76, %71 : vector<128x128xf32>
      %c0_61 = arith.constant 0 : index
      %c0_62 = arith.constant 0 : index
      %78 = vector.load %arg6[%c0_61, %c0_62] : memref<128x256xf32, #tpu.memory_space<vmem>>, vector<128x128xf32>
      tpu.vector_store %arg6[%c0_61, %c0_62], %77 {strides = array<i32>} : memref<128x256xf32, #tpu.memory_space<vmem>>, vector<128x128xf32>,
      %79 = vector.extract_strided_slice %63 {offsets = [0, 128], sizes = [128, 128], strides = [1, 1]} : vector<128x256xf32> to vector<128x128xf32>
      %80 = arith.addf %79, %67 : vector<128x128xf32>
      %81 = arith.mulf %68, %80 : vector<128x128xf32>
      %c0_63 = arith.constant 0 : index
      %c128_64 = arith.constant 128 : index
      %82 = vector.load %arg7[%c0_63, %c128_64] : memref<128x256xf32, #tpu.memory_space<vmem>>, vector<128x128xf32>
      %cst_65 = arith.constant 2.000000e+00 : f32
      %83 = vector.broadcast %cst_65 : f32 to vector<128x128xf32>
      %84 = arith.mulf %83, %82 : vector<128x128xf32>
      %c0_66 = arith.constant 0 : index
      %c128_67 = arith.constant 128 : index
      %85 = vector.load %arg6[%c0_66, %c128_67] : memref<128x256xf32, #tpu.memory_space<vmem>>, vector<128x128xf32>
      %86 = arith.subf %84, %85 : vector<128x128xf32>
      %87 = arith.addf %86, %81 : vector<128x128xf32>
      %c0_68 = arith.constant 0 : index
      %c0_69 = arith.constant 0 : index
      %88 = vector.load %arg4[%c0_68, %c0_69] : memref<128x128xf32, #tpu.memory_space<vmem>>, vector<128x128xf32>
      %89 = arith.mulf %88, %71 : vector<128x128xf32>
      %90 = arith.subf %87, %89 : vector<128x128xf32>
      %c0_70 = arith.constant 0 : index
      %c128_71 = arith.constant 128 : index
      %91 = vector.load %arg6[%c0_70, %c128_71] : memref<128x256xf32, #tpu.memory_space<vmem>>, vector<128x128xf32>
      tpu.vector_store %arg6[%c0_70, %c128_71], %90 {strides = array<i32>} : memref<128x256xf32, #tpu.memory_space<vmem>>, vector<128x128xf32>,
      %92 = arith.index_cast %55 : i32 to index
      %93 = memref.load %arg0[%92] : memref<128xf32, #tpu.memory_space<smem>>
      %c0_72 = arith.constant 0 : index
      %c0_73 = arith.constant 0 : index
      %94 = vector.load %arg3[%c0_72, %c0_73] : memref<8x128xf32, #tpu.memory_space<vmem>>, vector<8x128xf32>
      %95 = vector.broadcast %93 : f32 to vector<8x128xf32>
      %96 = arith.mulf %95, %94 : vector<8x128xf32>
      %c8_74 = arith.constant 8 : index
      %c0_75 = arith.constant 0 : index
      %97 = vector.load %arg6[%c8_74, %c0_75] : memref<128x256xf32, #tpu.memory_space<vmem>>, vector<8x128xf32>
      %98 = arith.addf %97, %96 : vector<8x128xf32>
      %c8_76 = arith.constant 8 : index
      %c0_77 = arith.constant 0 : index
      %99 = vector.load %arg6[%c8_76, %c0_77] : memref<128x256xf32, #tpu.memory_space<vmem>>, vector<8x128xf32>
      tpu.vector_store %arg6[%c8_76, %c0_77], %98 {strides = array<i32>} : memref<128x256xf32, #tpu.memory_space<vmem>>, vector<8x128xf32>,
      %c8_78 = arith.constant 8 : index
      %c128_79 = arith.constant 128 : index
      %100 = vector.load %arg6[%c8_78, %c128_79] : memref<128x256xf32, #tpu.memory_space<vmem>>, vector<8x128xf32>
      %c8_80 = arith.constant 8 : index
      %c0_81 = arith.constant 0 : index
      %101 = vector.load %arg4[%c8_80, %c0_81] : memref<128x128xf32, #tpu.memory_space<vmem>>, vector<8x128xf32>
      %102 = arith.mulf %101, %96 : vector<8x128xf32>
      %103 = arith.subf %100, %102 : vector<8x128xf32>
      %c8_82 = arith.constant 8 : index
      %c128_83 = arith.constant 128 : index
      %104 = vector.load %arg6[%c8_82, %c128_83] : memref<128x256xf32, #tpu.memory_space<vmem>>, vector<8x128xf32>
      tpu.vector_store %arg6[%c8_82, %c128_83], %103 {strides = array<i32>} : memref<128x256xf32, #tpu.memory_space<vmem>>, vector<8x128xf32>,
      %c3_i32 = arith.constant 3 : i32
      %105 = arith.andi %arg9, %c3_i32 : i32
      %c3_i32_84 = arith.constant 3 : i32
      %106 = arith.cmpi eq, %105, %c3_i32_84 : i32
      %107 = arith.extui %106 : i1 to i32
      %c0_i32_85 = arith.constant 0 : i32
      %108 = arith.cmpi ne, %107, %c0_i32_85 : i32
      scf.if %108 {
        %c2_i32_86 = arith.constant 2 : i32
        %109 = arith.muli %c2_i32_86, %arg9 : i32
        %c6_i32 = arith.constant 6 : i32
        %110 = arith.subi %109, %c6_i32 : i32
        %111 = tpu.assume_multiple %110, 8 : i32
        %c0_87 = arith.constant 0 : index
        %c0_88 = arith.constant 0 : index
        %112 = vector.load %arg8[%c0_87, %c0_88] : memref<8x128xf32, #tpu.memory_space<vmem>>, vector<8x128xf32>
        %113 = arith.index_cast %111 : i32 to index
        %c0_89 = arith.constant 0 : index
        %114 = vector.load %arg5[%113, %c0_89] : memref<128x128xf32, #tpu.memory_space<vmem>>, vector<8x128xf32>
        tpu.vector_store %arg5[%113, %c0_89], %112 {strides = array<i32>} : memref<128x128xf32, #tpu.memory_space<vmem>>, vector<8x128xf32>,
      } else {
      }
    }
    %c64_i32_4 = arith.constant 64 : i32
    return
  }
}

</mosaic_0001>

<llo_original>
// kernel: forward_born_layer.1
$region0: #{forward_born_layer.1}
  #allocation0 [shape = 'u32[]', space=smem, size = 0x4, offset = 0x4, fixed_abs, tag = 'smem constant byte address 0x4 - core index']
  #allocation1 [shape = 'u32[144,128]{1,0:T(1,128)}', space=vmem, size = 0x12000, scoped, tag = 'internal scratch']
  #allocation2 [shape = 'f32[128,256]{1,0:T(8,128)}', space=vmem, size = 0x20000, scoped, tag = 'scratch operand']
  #allocation3 [shape = 'f32[128,256]{1,0:T(8,128)}', space=vmem, size = 0x20000, scoped, tag = 'scratch operand']
  #allocation4 [shape = 'f32[8,128]{1,0:T(8,128)}', space=vmem, size = 0x1000, scoped, tag = 'scratch operand']
  %s0 = inlined_call_operand.vmem [shape: f32[128], index: 0, kind: input, shape index: {}]
  %s1 = inlined_call_operand.vmem [shape: bf16[128,128], index: 1, kind: input, shape index: {}]
  %s2 = inlined_call_operand.vmem [shape: f32[128,128], index: 2, kind: input, shape index: {}]
  %s3 = inlined_call_operand.vmem [shape: f32[8,128], index: 3, kind: input, shape index: {}]
  %s4 = inlined_call_operand.vmem [shape: f32[128,128], index: 4, kind: input, shape index: {}]
  %s5 = inlined_call_operand.vmem [shape: f32[128,128], index: 5, kind: output, shape index: {}]
  %s6 = sld [smem:[#allocation0]]
  $region45: #{forward_born_layer.1} parent=0
    _
  %s8 = ssub.s32 1, %s6
  %s9 = scalar_select 0, %s8, %s6
  $region1: #{forward_born_layer.1} parent=0
    #allocation5 [shape = 'u8[512]{0}', space=smem, size = 0x200, scoped, tag = 'input window, operand 0, single buffered']
    #allocation6 [shape = 's32[1]{0}', space=sflag, size = 0x4, scoped, tag = 'scoped memory for forward_born_layer.1']
    %10 = vsyncpa [#allocation6], 0
    // Predicated region
    $region2: #{forward_born_layer.1} parent=1 // pred_check
      _
    $region3: #{forward_born_layer.1} parent=1 // pred_check_branch
      %12 = sbr.rel (0) target = $region5
    $region4: #{forward_born_layer.1} parent=1 // pred_region
      %s14 = ssub.s32 16, 16
      %15 = vsyncadd [#allocation6], %s14
      %s17 = sshll.u32 %s0, 4
      %s18 = int_to_ptr.vmem [resolvable:$true] %s17
      %20 = dma.vmem_to_smem %s18, 16, [#allocation5], [#allocation6]
    $region5: #{forward_born_layer.1} parent=1 // pred_fallthru
      _
    // Predicated region
    $region6: #{forward_born_layer.1} parent=1 // pred_check
      _
    $region7: #{forward_born_layer.1} parent=1 // pred_check_branch
      %22 = sbr.rel (0) target = $region9
    $region8: #{forward_born_layer.1} parent=1 // pred_region
      _
    $region9: #{forward_born_layer.1} parent=1 // pred_fallthru
      _
    // Predicated region
    $region10: #{forward_born_layer.1} parent=1 // pred_check
      _
    $region11: #{forward_born_layer.1} parent=1 // pred_check_branch
      %24 = sbr.rel (0) target = $region13
    $region12: #{forward_born_layer.1} parent=1 // pred_region
      _
    $region13: #{forward_born_layer.1} parent=1 // pred_fallthru
      _
    // Predicated region
    $region14: #{forward_born_layer.1} parent=1 // pred_check
      _
    $region15: #{forward_born_layer.1} parent=1 // pred_check_branch
      %26 = sbr.rel (0) target = $region17
    $region16: #{forward_born_layer.1} parent=1 // pred_region
      _
    $region17: #{forward_born_layer.1} parent=1 // pred_fallthru
      _
    // Predicated region
    $region18: #{forward_born_layer.1} parent=1 // pred_check
      _
    $region19: #{forward_born_layer.1} parent=1 // pred_check_branch
      %28 = sbr.rel (0) target = $region21
    $region20: #{forward_born_layer.1} parent=1 // pred_region
      _
    $region21: #{forward_born_layer.1} parent=1 // pred_fallthru
      _
    // Predicated region
    $region22: #{forward_born_layer.1} parent=1 // pred_check
      _
    $region23: #{forward_born_layer.1} parent=1 // pred_check_branch
      %30 = sbr.rel (0) target = $region25
    $region24: #{forward_born_layer.1} parent=1 // pred_region
      %31 = dma.done [#allocation6], 16
    $region25: #{forward_born_layer.1} parent=1 // pred_fallthru
      _
    %32 = sfence
    %34 = vst [vmem:[#allocation2] sm:$0xff] 0.0
    %35 = vst [vmem:[#allocation2 + $0x8] sm:$0xff] 0.0
    %36 = vst [vmem:[#allocation2 + $0x10] sm:$0xff] 0.0
    %37 = vst [vmem:[#allocation2 + $0x18] sm:$0xff] 0.0
    %38 = vst [vmem:[#allocation2 + $0x20] sm:$0xff] 0.0
    %39 = vst [vmem:[#allocation2 + $0x28] sm:$0xff] 0.0
    %40 = vst [vmem:[#allocation2 + $0x30] sm:$0xff] 0.0
    %41 = vst [vmem:[#allocation2 + $0x38] sm:$0xff] 0.0
    %42 = vst [vmem:[#allocation2 + $0x40] sm:$0xff] 0.0
    %43 = vst [vmem:[#allocation2 + $0x48] sm:$0xff] 0.0
    %44 = vst [vmem:[#allocation2 + $0x50] sm:$0xff] 0.0
    %45 = vst [vmem:[#allocation2 + $0x58] sm:$0xff] 0.0
    %46 = vst [vmem:[#allocation2 + $0x60] sm:$0xff] 0.0
    %47 = vst [vmem:[#allocation2 + $0x68] sm:$0xff] 0.0
    %48 = vst [vmem:[#allocation2 + $0x70] sm:$0xff] 0.0
    %49 = vst [vmem:[#allocation2 + $0x78] sm:$0xff] 0.0
    %50 = vst [vmem:[#allocation2 + $0x80] sm:$0xff] 0.0
    %51 = vst [vmem:[#allocation2 + $0x88] sm:$0xff] 0.0
    %52 = vst [vmem:[#allocation2 + $0x90] sm:$0xff] 0.0
    %53 = vst [vmem:[#allocation2 + $0x98] sm:$0xff] 0.0
    %54 = vst [vmem:[#allocation2 + $0xa0] sm:$0xff] 0.0
    %55 = vst [vmem:[#allocation2 + $0xa8] sm:$0xff] 0.0
    %56 = vst [vmem:[#allocation2 + $0xb0] sm:$0xff] 0.0
    %57 = vst [vmem:[#allocation2 + $0xb8] sm:$0xff] 0.0
    %58 = vst [vmem:[#allocation2 + $0xc0] sm:$0xff] 0.0
    %59 = vst [vmem:[#allocation2 + $0xc8] sm:$0xff] 0.0
    %60 = vst [vmem:[#allocation2 + $0xd0] sm:$0xff] 0.0
    %61 = vst [vmem:[#allocation2 + $0xd8] sm:$0xff] 0.0
    %62 = vst [vmem:[#allocation2 + $0xe0] sm:$0xff] 0.0
    %63 = vst [vmem:[#allocation2 + $0xe8] sm:$0xff] 0.0
    %64 = vst [vmem:[#allocation2 + $0xf0] sm:$0xff] 0.0
    %65 = vst [vmem:[#allocation2 + $0xf8] sm:$0xff] 0.0
    %66 = vst [vmem:[#allocation3] sm:$0xff] 0.0
    %67 = vst [vmem:[#allocation3 + $0x8] sm:$0xff] 0.0
    %68 = vst [vmem:[#allocation3 + $0x10] sm:$0xff] 0.0
    %69 = vst [vmem:[#allocation3 + $0x18] sm:$0xff] 0.0
    %70 = vst [vmem:[#allocation3 + $0x20] sm:$0xff] 0.0
    %71 = vst [vmem:[#allocation3 + $0x28] sm:$0xff] 0.0
    %72 = vst [vmem:[#allocation3 + $0x30] sm:$0xff] 0.0
    %73 = vst [vmem:[#allocation3 + $0x38] sm:$0xff] 0.0
    %74 = vst [vmem:[#allocation3 + $0x40] sm:$0xff] 0.0
    %75 = vst [vmem:[#allocation3 + $0x48] sm:$0xff] 0.0
    %76 = vst [vmem:[#allocation3 + $0x50] sm:$0xff] 0.0
    %77 = vst [vmem:[#allocation3 + $0x58] sm:$0xff] 0.0
    %78 = vst [vmem:[#allocation3 + $0x60] sm:$0xff] 0.0
    %79 = vst [vmem:[#allocation3 + $0x68] sm:$0xff] 0.0
    %80 = vst [vmem:[#allocation3 + $0x70] sm:$0xff] 0.0
    %81 = vst [vmem:[#allocation3 + $0x78] sm:$0xff] 0.0
    %82 = vst [vmem:[#allocation3 + $0x80] sm:$0xff] 0.0
    %83 = vst [vmem:[#allocation3 + $0x88] sm:$0xff] 0.0
    %84 = vst [vmem:[#allocation3 + $0x90] sm:$0xff] 0.0
    %85 = vst [vmem:[#allocation3 + $0x98] sm:$0xff] 0.0
    %86 = vst [vmem:[#allocation3 + $0xa0] sm:$0xff] 0.0
    %87 = vst [vmem:[#allocation3 + $0xa8] sm:$0xff] 0.0
    %88 = vst [vmem:[#allocation3 + $0xb0] sm:$0xff] 0.0
    %89 = vst [vmem:[#allocation3 + $0xb8] sm:$0xff] 0.0
    %90 = vst [vmem:[#allocation3 + $0xc0] sm:$0xff] 0.0
    %91 = vst [vmem:[#allocation3 + $0xc8] sm:$0xff] 0.0
    %92 = vst [vmem:[#allocation3 + $0xd0] sm:$0xff] 0.0
    %93 = vst [vmem:[#allocation3 + $0xd8] sm:$0xff] 0.0
    %94 = vst [vmem:[#allocation3 + $0xe0] sm:$0xff] 0.0
    %95 = vst [vmem:[#allocation3 + $0xe8] sm:$0xff] 0.0
    %96 = vst [vmem:[#allocation3 + $0xf0] sm:$0xff] 0.0
    %97 = vst [vmem:[#allocation3 + $0xf8] sm:$0xff] 0.0
    loop: start=0, step=1, limit=64
    $region26: #{forward_born_layer.1} parent=1 // loop_pre_header
      _
    $region27: #{forward_born_layer.1} parent=1 // loop_header
      %s99 = sphi 0, %s103
      %p100 = scmp.ge.s32.totalorder %s99, 64
    $region28: #{forward_born_layer.1} parent=1 // loop_header_branch
      %102 = sbr.rel (%p100) target = $region32
    $region29: #{forward_born_layer.1} parent=1 // loop_body
      %s104 = smul.u32 %s99, 2
      %v105 = vld [vmem:[#allocation2 + $0x1a] ss:$0 sm:$0xff]
      %s106 = sand.u32 %s104, 7
      %s107 = scalar_lea.vmem [#allocation4], %s106
      %108 = vst [vmem:[%s107] sm:$0x1] %v105
      %v109 = vld [vmem:[%s1] sm:$0xf]
      %v110 = vld [vmem:[%s1 + $0x4] sm:$0xf]
      %v111 = vld [vmem:[%s1 + $0x8] sm:$0xf]
      %v112 = vld [vmem:[%s1 + $0xc] sm:$0xf]
      %v113 = vld [vmem:[%s1 + $0x10] sm:$0xf]
      %v114 = vld [vmem:[%s1 + $0x14] sm:$0xf]
      %v115 = vld [vmem:[%s1 + $0x18] sm:$0xf]
      %v116 = vld [vmem:[%s1 + $0x1c] sm:$0xf]
      %v117 = vld [vmem:[%s1 + $0x20] sm:$0xf]
      %v118 = vld [vmem:[%s1 + $0x24] sm:$0xf]
      %v119 = vld [vmem:[%s1 + $0x28] sm:$0xf]
      %v120 = vld [vmem:[%s1 + $0x2c] sm:$0xf]
      %v121 = vld [vmem:[%s1 + $0x30] sm:$0xf]
      %v122 = vld [vmem:[%s1 + $0x34] sm:$0xf]
      %v123 = vld [vmem:[%s1 + $0x38] sm:$0xf]
      %v124 = vld [vmem:[%s1 + $0x3c] sm:$0xf]
      %v125 = vld [vmem:[#allocation2] sm:$0xff]
      %v126 = vld [vmem:[#allocation2 + $0x8] sm:$0xff]
      %v127 = vld [vmem:[#allocation2 + $0x10] sm:$0xff]
      %v128 = vld [vmem:[#allocation2 + $0x18] sm:$0xff]
      %v129 = vld [vmem:[#allocation2 + $0x20] sm:$0xff]
      %v130 = vld [vmem:[#allocation2 + $0x28] sm:$0xff]
      %v131 = vld [vmem:[#allocation2 + $0x30] sm:$0xff]
      %v132 = vld [vmem:[#allocation2 + $0x38] sm:$0xff]
      %v133 = vld [vmem:[#allocation2 + $0x40] sm:$0xff]
      %v134 = vld [vmem:[#allocation2 + $0x48] sm:$0xff]
      %v135 = vld [vmem:[#allocation2 + $0x50] sm:$0xff]
      %v136 = vld [vmem:[#allocation2 + $0x58] sm:$0xff]
      %v137 = vld [vmem:[#allocation2 + $0x60] sm:$0xff]
      %v138 = vld [vmem:[#allocation2 + $0x68] sm:$0xff]
      %v139 = vld [vmem:[#allocation2 + $0x70] sm:$0xff]
      %v140 = vld [vmem:[#allocation2 + $0x78] sm:$0xff]
      %v141 = vld [vmem:[#allocation2 + $0x80] sm:$0xff]
      %v142 = vld [vmem:[#allocation2 + $0x88] sm:$0xff]
      %v143 = vld [vmem:[#allocation2 + $0x90] sm:$0xff]
      %v144 = vld [vmem:[#allocation2 + $0x98] sm:$0xff]
      %v145 = vld [vmem:[#allocation2 + $0xa0] sm:$0xff]
      %v146 = vld [vmem:[#allocation2 + $0xa8] sm:$0xff]
      %v147 = vld [vmem:[#allocation2 + $0xb0] sm:$0xff]
      %v148 = vld [vmem:[#allocation2 + $0xb8] sm:$0xff]
      %v149 = vld [vmem:[#allocation2 + $0xc0] sm:$0xff]
      %v150 = vld [vmem:[#allocation2 + $0xc8] sm:$0xff]
      %v151 = vld [vmem:[#allocation2 + $0xd0] sm:$0xff]
      %v152 = vld [vmem:[#allocation2 + $0xd8] sm:$0xff]
      %v153 = vld [vmem:[#allocation2 + $0xe0] sm:$0xff]
      %v154 = vld [vmem:[#allocation2 + $0xe8] sm:$0xff]
      %v155 = vld [vmem:[#allocation2 + $0xf0] sm:$0xff]
      %v156 = vld [vmem:[#allocation2 + $0xf8] sm:$0xff]
      %v157 = vpack.c.bf16 %v127, %v125
      %v158 = vpack.c.bf16 %v128, %v126
      %v159 = vpack.c.bf16 %v131, %v129
      %v160 = vpack.c.bf16 %v132, %v130
      %v161 = vpack.c.bf16 %v135, %v133
      %v162 = vpack.c.bf16 %v136, %v134
      %v163 = vpack.c.bf16 %v139, %v137
      %v164 = vpack.c.bf16 %v140, %v138
      %v165 = vpack.c.bf16 %v143, %v141
      %v166 = vpack.c.bf16 %v144, %v142
      %v167 = vpack.c.bf16 %v147, %v145
      %v168 = vpack.c.bf16 %v148, %v146
      %v169 = vpack.c.bf16 %v151, %v149
      %v170 = vpack.c.bf16 %v152, %v150
      %v171 = vpack.c.bf16 %v155, %v153
      %v172 = vpack.c.bf16 %v156, %v154
      %v189 = vunpack.c.l.b16 %v109
      %v190 = vunpack.c.l.b16 %v110
      %v191 = vunpack.c.l.b16 %v111
      %v192 = vunpack.c.l.b16 %v112
      %v193 = vunpack.c.l.b16 %v113
      %v194 = vunpack.c.l.b16 %v114
      %v195 = vunpack.c.l.b16 %v115
      %v196 = vunpack.c.l.b16 %v116
      %v197 = vunpack.c.l.b16 %v117
      %v198 = vunpack.c.l.b16 %v118
      %v199 = vunpack.c.l.b16 %v119
      %v200 = vunpack.c.l.b16 %v120
      %v201 = vunpack.c.l.b16 %v121
      %v202 = vunpack.c.l.b16 %v122
      %v203 = vunpack.c.l.b16 %v123
      %v204 = vunpack.c.l.b16 %v124
      %v205 = vpack.c.b16 %v190, %v189
      %v206 = vpack.c.b16 %v192, %v191
      %v207 = vpack.c.b16 %v194, %v193
      %v208 = vpack.c.b16 %v196, %v195
      %v209 = vpack.c.b16 %v198, %v197
      %v210 = vpack.c.b16 %v200, %v199
      %v211 = vpack.c.b16 %v202, %v201
      %v212 = vpack.c.b16 %v204, %v203
      %221 = vmatprep.subr.bf16.mxu0 %v158
      %222 = vmatpush1.bf16.msra.mxu0 %v157
      %223 = vmatprep.subr.bf16.mxu0 %v160
      %224 = vmatpush1.bf16.msra.mxu0 %v159
      %225 = vmatprep.subr.bf16.mxu0 %v162
      %226 = vmatpush1.bf16.msra.mxu0 %v161
      %227 = vmatprep.subr.bf16.mxu0 %v164
      %228 = vmatpush1.bf16.msra.mxu0 %v163
      %229 = vmatprep.subr.bf16.mxu0 %v166
      %230 = vmatpush1.bf16.msra.mxu0 %v165
      %231 = vmatprep.subr.bf16.mxu0 %v168
      %232 = vmatpush1.bf16.msra.mxu0 %v167
      %233 = vmatprep.subr.bf16.mxu0 %v170
      %234 = vmatpush1.bf16.msra.mxu0 %v169
      %235 = vmatprep.subr.bf16.mxu0 %v172
      %236 = vmatpush1.bf16.msra.mxu0 %v171
      %237 = vmatprep.subr.bf16.mxu0 0
      %238 = vmatpush1.bf16.msra.mxu0 0
      %239 = vmatprep.subr.bf16.mxu0 0
      %240 = vmatpush1.bf16.msra.mxu0 0
      %241 = vmatprep.subr.bf16.mxu0 0
      %242 = vmatpush1.bf16.msra.mxu0 0
      %243 = vmatprep.subr.bf16.mxu0 0
      %244 = vmatpush1.bf16.msra.mxu0 0
      %245 = vmatprep.subr.bf16.mxu0 0
      %246 = vmatpush1.bf16.msra.mxu0 0
      %247 = vmatprep.subr.bf16.mxu0 0
      %248 = vmatpush1.bf16.msra.mxu0 0
      %249 = vmatprep.subr.bf16.mxu0 0
      %250 = vmatpush1.bf16.msra.mxu0 0
      %251 = vmatprep.subr.bf16.mxu0 0
      %252 = vmatpush1.bf16.msra.mxu0 0
      %253 = vmatprep.mubr.bf16.mxu0 0
      %254 = vmatmul.mubr.bf16.gmra.mrb[0].mxu0 %v205
      %v255 = vpop.f32.mrb[0].mxu0
      %v256 = vadd.f32 0.0, %v255
      %v257 = vpop.f32.mrb[0].mxu0
      %v258 = vadd.f32 0.0, %v257
      %v259 = vpop.f32.mrb[0].mxu0
      %v260 = vadd.f32 0.0, %v259
      %v261 = vpop.f32.mrb[0].mxu0
      %v262 = vadd.f32 0.0, %v261
      %263 = vmatprep.mubr.bf16.mxu0 0
      %264 = vmatmul.mubr.bf16.gmra.mrb[0].mxu0 %v206
      %v265 = vpop.f32.mrb[0].mxu0
      %v266 = vadd.f32 0.0, %v265
      %v267 = vpop.f32.mrb[0].mxu0
      %v268 = vadd.f32 0.0, %v267
      %v269 = vpop.f32.mrb[0].mxu0
      %v270 = vadd.f32 0.0, %v269
      %v271 = vpop.f32.mrb[0].mxu0
      %v272 = vadd.f32 0.0, %v271
      %273 = vmatprep.mubr.bf16.mxu0 0
      %274 = vmatmul.mubr.bf16.gmra.mrb[0].mxu0 %v207
      %v275 = vpop.f32.mrb[0].mxu0
      %v276 = vadd.f32 0.0, %v275
      %v277 = vpop.f32.mrb[0].mxu0
      %v278 = vadd.f32 0.0, %v277
      %v279 = vpop.f32.mrb[0].mxu0
      %v280 = vadd.f32 0.0, %v279
      %v281 = vpop.f32.mrb[0].mxu0
      %v282 = vadd.f32 0.0, %v281
      %283 = vmatprep.mubr.bf16.mxu0 0
      %284 = vmatmul.mubr.bf16.gmra.mrb[0].mxu0 %v208
      %v285 = vpop.f32.mrb[0].mxu0
      %v286 = vadd.f32 0.0, %v285
      %v287 = vpop.f32.mrb[0].mxu0
      %v288 = vadd.f32 0.0, %v287
      %v289 = vpop.f32.mrb[0].mxu0
      %v290 = vadd.f32 0.0, %v289
      %v291 = vpop.f32.mrb[0].mxu0
      %v292 = vadd.f32 0.0, %v291
      %293 = vmatprep.mubr.bf16.mxu0 0
      %294 = vmatmul.mubr.bf16.gmra.mrb[0].mxu0 %v209
      %v295 = vpop.f32.mrb[0].mxu0
      %v296 = vadd.f32 0.0, %v295
      %v297 = vpop.f32.mrb[0].mxu0
      %v298 = vadd.f32 0.0, %v297
      %v299 = vpop.f32.mrb[0].mxu0
      %v300 = vadd.f32 0.0, %v299
      %v301 = vpop.f32.mrb[0].mxu0
      %v302 = vadd.f32 0.0, %v301
      %303 = vmatprep.mubr.bf16.mxu0 0
      %304 = vmatmul.mubr.bf16.gmra.mrb[0].mxu0 %v210
      %v305 = vpop.f32.mrb[0].mxu0
      %v306 = vadd.f32 0.0, %v305
      %v307 = vpop.f32.mrb[0].mxu0
      %v308 = vadd.f32 0.0, %v307
      %v309 = vpop.f32.mrb[0].mxu0
      %v310 = vadd.f32 0.0, %v309
      %v311 = vpop.f32.mrb[0].mxu0
      %v312 = vadd.f32 0.0, %v311
      %313 = vmatprep.mubr.bf16.mxu0 0
      %314 = vmatmul.mubr.bf16.gmra.mrb[0].mxu0 %v211
      %v315 = vpop.f32.mrb[0].mxu0
      %v316 = vadd.f32 0.0, %v315
      %v317 = vpop.f32.mrb[0].mxu0
      %v318 = vadd.f32 0.0, %v317
      %v319 = vpop.f32.mrb[0].mxu0
      %v320 = vadd.f32 0.0, %v319
      %v321 = vpop.f32.mrb[0].mxu0
      %v322 = vadd.f32 0.0, %v321
      %323 = vmatprep.mubr.bf16.mxu0 0
      %324 = vmatmul.mubr.bf16.gmra.mrb[0].mxu0 %v212
      %v325 = vpop.f32.mrb[0].mxu0
      %v326 = vadd.f32 0.0, %v325
      %v327 = vpop.f32.mrb[0].mxu0
      %v328 = vadd.f32 0.0, %v327
      %v329 = vpop.f32.mrb[0].mxu0
      %v330 = vadd.f32 0.0, %v329
      %v331 = vpop.f32.mrb[0].mxu0
      %v332 = vadd.f32 0.0, %v331
      %333 = vdwg.mxu0
      %334 = vmatprep.subr.bf16.mxu0 0
      %335 = vmatpush1.bf16.msra.mxu0 %v205
      %336 = vmatprep.subr.bf16.mxu0 0
      %337 = vmatpush1.bf16.msra.mxu0 %v206
      %338 = vmatprep.subr.bf16.mxu0 0
      %339 = vmatpush1.bf16.msra.mxu0 %v207
      %340 = vmatprep.subr.bf16.mxu0 0
      %341 = vmatpush1.bf16.msra.mxu0 %v208
      %342 = vmatprep.subr.bf16.mxu0 0
      %343 = vmatpush1.bf16.msra.mxu0 %v209
      %344 = vmatprep.subr.bf16.mxu0 0
      %345 = vmatpush1.bf16.msra.mxu0 %v210
      %346 = vmatprep.subr.bf16.mxu0 0
      %347 = vmatpush1.bf16.msra.mxu0 %v211
      %348 = vmatprep.subr.bf16.mxu0 0
      %349 = vmatpush1.bf16.msra.mxu0 %v212
      %350 = vmatprep.subr.bf16.mxu0 0
      %351 = vmatpush1.bf16.msra.mxu0 0
      %352 = vmatprep.subr.bf16.mxu0 0
      %353 = vmatpush1.bf16.msra.mxu0 0
      %354 = vmatprep.subr.bf16.mxu0 0
      %355 = vmatpush1.bf16.msra.mxu0 0
      %356 = vmatprep.subr.bf16.mxu0 0
      %357 = vmatpush1.bf16.msra.mxu0 0
      %358 = vmatprep.subr.bf16.mxu0 0
      %359 = vmatpush1.bf16.msra.mxu0 0
      %360 = vmatprep.subr.bf16.mxu0 0
      %361 = vmatpush1.bf16.msra.mxu0 0
      %362 = vmatprep.subr.bf16.mxu0 0
      %363 = vmatpush1.bf16.msra.mxu0 0
      %364 = vmatprep.subr.bf16.mxu0 0
      %365 = vmatpush1.bf16.msra.mxu0 0
      %366 = vmatprep.mubr.bf16.mxu0 0
      %367 = vmatmul.mubr.bf16.gmra.mrb[0].mxu0 %v157
      %v368 = vpop.f32.mrb[0].mxu0
      %v369 = vadd.f32 0.0, %v368
      %v370 = vpop.f32.mrb[0].mxu0
      %v371 = vpop.f32.mrb[0].mxu0
      %v372 = vadd.f32 0.0, %v371
      %v373 = vpop.f32.mrb[0].mxu0
      %374 = vmatprep.mubr.bf16.mxu0 0
      %375 = vmatmul.mubr.bf16.gmra.mrb[0].mxu0 %v159
      %v376 = vpop.f32.mrb[0].mxu0
      %v377 = vadd.f32 0.0, %v376
      %v378 = vpop.f32.mrb[0].mxu0
      %v379 = vpop.f32.mrb[0].mxu0
      %v380 = vadd.f32 0.0, %v379
      %v381 = vpop.f32.mrb[0].mxu0
      %382 = vmatprep.mubr.bf16.mxu0 0
      %383 = vmatmul.mubr.bf16.gmra.mrb[0].mxu0 %v161
      %v384 = vpop.f32.mrb[0].mxu0
      %v385 = vadd.f32 0.0, %v384
      %v386 = vpop.f32.mrb[0].mxu0
      %v387 = vpop.f32.mrb[0].mxu0
      %v388 = vadd.f32 0.0, %v387
      %v389 = vpop.f32.mrb[0].mxu0
      %390 = vmatprep.mubr.bf16.mxu0 0
      %391 = vmatmul.mubr.bf16.gmra.mrb[0].mxu0 %v163
      %v392 = vpop.f32.mrb[0].mxu0
      %v393 = vadd.f32 0.0, %v392
      %v394 = vpop.f32.mrb[0].mxu0
      %v395 = vpop.f32.mrb[0].mxu0
      %v396 = vadd.f32 0.0, %v395
      %v397 = vpop.f32.mrb[0].mxu0
      %398 = vmatprep.mubr.bf16.mxu0 0
      %399 = vmatmul.mubr.bf16.gmra.mrb[0].mxu0 %v165
      %v400 = vpop.f32.mrb[0].mxu0
      %v401 = vadd.f32 0.0, %v400
      %v402 = vpop.f32.mrb[0].mxu0
      %v403 = vpop.f32.mrb[0].mxu0
      %v404 = vadd.f32 0.0, %v403
      %v405 = vpop.f32.mrb[0].mxu0
      %406 = vmatprep.mubr.bf16.mxu0 0
      %407 = vmatmul.mubr.bf16.gmra.mrb[0].mxu0 %v167
      %v408 = vpop.f32.mrb[0].mxu0
      %v409 = vadd.f32 0.0, %v408
      %v410 = vpop.f32.mrb[0].mxu0
      %v411 = vpop.f32.mrb[0].mxu0
      %v412 = vadd.f32 0.0, %v411
      %v413 = vpop.f32.mrb[0].mxu0
      %414 = vmatprep.mubr.bf16.mxu0 0
      %415 = vmatmul.mubr.bf16.gmra.mrb[0].mxu0 %v169
      %v416 = vpop.f32.mrb[0].mxu0
      %v417 = vadd.f32 0.0, %v416
      %v418 = vpop.f32.mrb[0].mxu0
      %v419 = vpop.f32.mrb[0].mxu0
      %v420 = vadd.f32 0.0, %v419
      %v421 = vpop.f32.mrb[0].mxu0
      %422 = vmatprep.mubr.bf16.mxu0 0
      %423 = vmatmul.mubr.bf16.gmra.mrb[0].mxu0 %v171
      %v424 = vpop.f32.mrb[0].mxu0
      %v425 = vadd.f32 0.0, %v424
      %v426 = vpop.f32.mrb[0].mxu0
      %v427 = vpop.f32.mrb[0].mxu0
      %v428 = vadd.f32 0.0, %v427
      %v429 = vpop.f32.mrb[0].mxu0
      %430 = vdwg.mxu0
      %431 = vmatprep.subr.bf16.mxu0 0
      %432 = vmatpush1.bf16.msra.mxu0 %v205
      %433 = vmatprep.subr.bf16.mxu0 0
      %434 = vmatpush1.bf16.msra.mxu0 %v206
      %435 = vmatprep.subr.bf16.mxu0 0
      %436 = vmatpush1.bf16.msra.mxu0 %v207
      %437 = vmatprep.subr.bf16.mxu0 0
      %438 = vmatpush1.bf16.msra.mxu0 %v208
      %439 = vmatprep.subr.bf16.mxu0 0
      %440 = vmatpush1.bf16.msra.mxu0 %v209
      %441 = vmatprep.subr.bf16.mxu0 0
      %442 = vmatpush1.bf16.msra.mxu0 %v210
      %443 = vmatprep.subr.bf16.mxu0 0
      %444 = vmatpush1.bf16.msra.mxu0 %v211
      %445 = vmatprep.subr.bf16.mxu0 0
      %446 = vmatpush1.bf16.msra.mxu0 %v212
      %447 = vmatprep.subr.bf16.mxu0 0
      %448 = vmatpush1.bf16.msra.mxu0 0
      %449 = vmatprep.subr.bf16.mxu0 0
      %450 = vmatpush1.bf16.msra.mxu0 0
      %451 = vmatprep.subr.bf16.mxu0 0
      %452 = vmatpush1.bf16.msra.mxu0 0
      %453 = vmatprep.subr.bf16.mxu0 0
      %454 = vmatpush1.bf16.msra.mxu0 0
      %455 = vmatprep.subr.bf16.mxu0 0
      %456 = vmatpush1.bf16.msra.mxu0 0
      %457 = vmatprep.subr.bf16.mxu0 0
      %458 = vmatpush1.bf16.msra.mxu0 0
      %459 = vmatprep.subr.bf16.mxu0 0
      %460 = vmatpush1.bf16.msra.mxu0 0
      %461 = vmatprep.subr.bf16.mxu0 0
      %462 = vmatpush1.bf16.msra.mxu0 0
      %463 = vmatprep.mubr.bf16.mxu0 0
      %464 = vmatmul.mubr.bf16.gmra.mrb[0].mxu0 %v158
      %v465 = vpop.f32.mrb[0].mxu0
      %v466 = vadd.f32 0.0, %v465
      %v467 = vpop.f32.mrb[0].mxu0
      %v468 = vpop.f32.mrb[0].mxu0
      %v469 = vadd.f32 0.0, %v468
      %v470 = vpop.f32.mrb[0].mxu0
      %471 = vmatprep.mubr.bf16.mxu0 0
      %472 = vmatmul.mubr.bf16.gmra.mrb[0].mxu0 %v160
      %v473 = vpop.f32.mrb[0].mxu0
      %v474 = vadd.f32 0.0, %v473
      %v475 = vpop.f32.mrb[0].mxu0
      %v476 = vpop.f32.mrb[0].mxu0
      %v477 = vadd.f32 0.0, %v476
      %v478 = vpop.f32.mrb[0].mxu0
      %479 = vmatprep.mubr.bf16.mxu0 0
      %480 = vmatmul.mubr.bf16.gmra.mrb[0].mxu0 %v162
      %v481 = vpop.f32.mrb[0].mxu0
      %v482 = vadd.f32 0.0, %v481
      %v483 = vpop.f32.mrb[0].mxu0
      %v484 = vpop.f32.mrb[0].mxu0
      %v485 = vadd.f32 0.0, %v484
      %v486 = vpop.f32.mrb[0].mxu0
      %487 = vmatprep.mubr.bf16.mxu0 0
      %488 = vmatmul.mubr.bf16.gmra.mrb[0].mxu0 %v164
      %v489 = vpop.f32.mrb[0].mxu0
      %v490 = vadd.f32 0.0, %v489
      %v491 = vpop.f32.mrb[0].mxu0
      %v492 = vpop.f32.mrb[0].mxu0
      %v493 = vadd.f32 0.0, %v492
      %v494 = vpop.f32.mrb[0].mxu0
      %495 = vmatprep.mubr.bf16.mxu0 0
      %496 = vmatmul.mubr.bf16.gmra.mrb[0].mxu0 %v166
      %v497 = vpop.f32.mrb[0].mxu0
      %v498 = vadd.f32 0.0, %v497
      %v499 = vpop.f32.mrb[0].mxu0
      %v500 = vpop.f32.mrb[0].mxu0
      %v501 = vadd.f32 0.0, %v500
      %v502 = vpop.f32.mrb[0].mxu0
      %503 = vmatprep.mubr.bf16.mxu0 0
      %504 = vmatmul.mubr.bf16.gmra.mrb[0].mxu0 %v168
      %v505 = vpop.f32.mrb[0].mxu0
      %v506 = vadd.f32 0.0, %v505
      %v507 = vpop.f32.mrb[0].mxu0
      %v508 = vpop.f32.mrb[0].mxu0
      %v509 = vadd.f32 0.0, %v508
      %v510 = vpop.f32.mrb[0].mxu0
      %511 = vmatprep.mubr.bf16.mxu0 0
      %512 = vmatmul.mubr.bf16.gmra.mrb[0].mxu0 %v170
      %v513 = vpop.f32.mrb[0].mxu0
      %v514 = vadd.f32 0.0, %v513
      %v515 = vpop.f32.mrb[0].mxu0
      %v516 = vpop.f32.mrb[0].mxu0
      %v517 = vadd.f32 0.0, %v516
      %v518 = vpop.f32.mrb[0].mxu0
      %519 = vmatprep.mubr.bf16.mxu0 0
      %520 = vmatmul.mubr.bf16.gmra.mrb[0].mxu0 %v172
      %v521 = vpop.f32.mrb[0].mxu0
      %v522 = vadd.f32 0.0, %v521
      %v523 = vpop.f32.mrb[0].mxu0
      %v524 = vpop.f32.mrb[0].mxu0
      %v525 = vadd.f32 0.0, %v524
      %v526 = vpop.f32.mrb[0].mxu0
      %527 = vdwg.mxu0
      %v528 = vld [vmem:[%s2] sm:$0xff]
      %v529 = vld [vmem:[%s2 + $0x8] sm:$0xff]
      %v530 = vld [vmem:[%s2 + $0x10] sm:$0xff]
      %v531 = vld [vmem:[%s2 + $0x18] sm:$0xff]
      %v532 = vld [vmem:[%s2 + $0x20] sm:$0xff]
      %v533 = vld [vmem:[%s2 + $0x28] sm:$0xff]
      %v534 = vld [vmem:[%s2 + $0x30] sm:$0xff]
      %v535 = vld [vmem:[%s2 + $0x38] sm:$0xff]
      %v536 = vld [vmem:[%s2 + $0x40] sm:$0xff]
      %v537 = vld [vmem:[%s2 + $0x48] sm:$0xff]
      %v538 = vld [vmem:[%s2 + $0x50] sm:$0xff]
      %v539 = vld [vmem:[%s2 + $0x58] sm:$0xff]
      %v540 = vld [vmem:[%s2 + $0x60] sm:$0xff]
      %v541 = vld [vmem:[%s2 + $0x68] sm:$0xff]
      %v542 = vld [vmem:[%s2 + $0x70] sm:$0xff]
      %v543 = vld [vmem:[%s2 + $0x78] sm:$0xff]
      %v544 = vadd.f32 %v256, %v369
      %v545 = vadd.f32 %v260, %v372
      %v546 = vadd.f32 %v266, %v377
      %v547 = vadd.f32 %v270, %v380
      %v548 = vadd.f32 %v276, %v385
      %v549 = vadd.f32 %v280, %v388
      %v550 = vadd.f32 %v286, %v393
      %v551 = vadd.f32 %v290, %v396
      %v552 = vadd.f32 %v296, %v401
      %v553 = vadd.f32 %v300, %v404
      %v554 = vadd.f32 %v306, %v409
      %v555 = vadd.f32 %v310, %v412
      %v556 = vadd.f32 %v316, %v417
      %v557 = vadd.f32 %v320, %v420
      %v558 = vadd.f32 %v326, %v425
      %v559 = vadd.f32 %v330, %v428
      %v560 = vmul.f32 %v528, %v544
      %v561 = vmul.f32 %v529, %v545
      %v562 = vmul.f32 %v530, %v546
      %v563 = vmul.f32 %v531, %v547
      %v564 = vmul.f32 %v532, %v548
      %v565 = vmul.f32 %v533, %v549
      %v566 = vmul.f32 %v534, %v550
      %v567 = vmul.f32 %v535, %v551
      %v568 = vmul.f32 %v536, %v552
      %v569 = vmul.f32 %v537, %v553
      %v570 = vmul.f32 %v538, %v554
      %v571 = vmul.f32 %v539, %v555
      %v572 = vmul.f32 %v540, %v556
      %v573 = vmul.f32 %v541, %v557
      %v574 = vmul.f32 %v542, %v558
      %v575 = vmul.f32 %v543, %v559
      %v576 = vld [vmem:[#allocation2] sm:$0xff]
      %v577 = vld [vmem:[#allocation2 + $0x10] sm:$0xff]
      %v578 = vld [vmem:[#allocation2 + $0x20] sm:$0xff]
      %v579 = vld [vmem:[#allocation2 + $0x30] sm:$0xff]
      %v580 = vld [vmem:[#allocation2 + $0x40] sm:$0xff]
      %v581 = vld [vmem:[#allocation2 + $0x50] sm:$0xff]
      %v582 = vld [vmem:[#allocation2 + $0x60] sm:$0xff]
      %v583 = vld [vmem:[#allocation2 + $0x70] sm:$0xff]
      %v584 = vld [vmem:[#allocation2 + $0x80] sm:$0xff]
      %v585 = vld [vmem:[#allocation2 + $0x90] sm:$0xff]
      %v586 = vld [vmem:[#allocation2 + $0xa0] sm:$0xff]
      %v587 = vld [vmem:[#allocation2 + $0xb0] sm:$0xff]
      %v588 = vld [vmem:[#allocation2 + $0xc0] sm:$0xff]
      %v589 = vld [vmem:[#allocation2 + $0xd0] sm:$0xff]
      %v590 = vld [vmem:[#allocation2 + $0xe0] sm:$0xff]
      %v591 = vld [vmem:[#allocation2 + $0xf0] sm:$0xff]
      %v592 = vmul.f32 %v576, 2.0
      %v593 = vmul.f32 %v577, 2.0
      %v594 = vmul.f32 %v578, 2.0
      %v595 = vmul.f32 %v579, 2.0
      %v596 = vmul.f32 %v580, 2.0
      %v597 = vmul.f32 %v581, 2.0
      %v598 = vmul.f32 %v582, 2.0
      %v599 = vmul.f32 %v583, 2.0
      %v600 = vmul.f32 %v584, 2.0
      %v601 = vmul.f32 %v585, 2.0
      %v602 = vmul.f32 %v586, 2.0
      %v603 = vmul.f32 %v587, 2.0
      %v604 = vmul.f32 %v588, 2.0
      %v605 = vmul.f32 %v589, 2.0
      %v606 = vmul.f32 %v590, 2.0
      %v607 = vmul.f32 %v591, 2.0
      %v608 = vld [vmem:[#allocation3] sm:$0xff]
      %v609 = vld [vmem:[#allocation3 + $0x10] sm:$0xff]
      %v610 = vld [vmem:[#allocation3 + $0x20] sm:$0xff]
      %v611 = vld [vmem:[#allocation3 + $0x30] sm:$0xff]
      %v612 = vld [vmem:[#allocation3 + $0x40] sm:$0xff]
      %v613 = vld [vmem:[#allocation3 + $0x50] sm:$0xff]
      %v614 = vld [vmem:[#allocation3 + $0x60] sm:$0xff]
      %v615 = vld [vmem:[#allocation3 + $0x70] sm:$0xff]
      %v616 = vld [vmem:[#allocation3 + $0x80] sm:$0xff]
      %v617 = vld [vmem:[#allocation3 + $0x90] sm:$0xff]
      %v618 = vld [vmem:[#allocation3 + $0xa0] sm:$0xff]
      %v619 = vld [vmem:[#allocation3 + $0xb0] sm:$0xff]
      %v620 = vld [vmem:[#allocation3 + $0xc0] sm:$0xff]
      %v621 = vld [vmem:[#allocation3 + $0xd0] sm:$0xff]
      %v622 = vld [vmem:[#allocation3 + $0xe0] sm:$0xff]
      %v623 = vld [vmem:[#allocation3 + $0xf0] sm:$0xff]
      %v624 = vsub.f32 %v592, %v608
      %v625 = vsub.f32 %v593, %v609
      %v626 = vsub.f32 %v594, %v610
      %v627 = vsub.f32 %v595, %v611
      %v628 = vsub.f32 %v596, %v612
      %v629 = vsub.f32 %v597, %v613
      %v630 = vsub.f32 %v598, %v614
      %v631 = vsub.f32 %v599, %v615
      %v632 = vsub.f32 %v600, %v616
      %v633 = vsub.f32 %v601, %v617
      %v634 = vsub.f32 %v602, %v618
      %v635 = vsub.f32 %v603, %v619
      %v636 = vsub.f32 %v604, %v620
      %v637 = vsub.f32 %v605, %v621
      %v638 = vsub.f32 %v606, %v622
      %v639 = vsub.f32 %v607, %v623
      %v640 = vadd.f32 %v624, %v560
      %v641 = vadd.f32 %v625, %v561
      %v642 = vadd.f32 %v626, %v562
      %v643 = vadd.f32 %v627, %v563
      %v644 = vadd.f32 %v628, %v564
      %v645 = vadd.f32 %v629, %v565
      %v646 = vadd.f32 %v630, %v566
      %v647 = vadd.f32 %v631, %v567
      %v648 = vadd.f32 %v632, %v568
      %v649 = vadd.f32 %v633, %v569
      %v650 = vadd.f32 %v634, %v570
      %v651 = vadd.f32 %v635, %v571
      %v652 = vadd.f32 %v636, %v572
      %v653 = vadd.f32 %v637, %v573
      %v654 = vadd.f32 %v638, %v574
      %v655 = vadd.f32 %v639, %v575
      %656 = vst [vmem:[#allocation3] sm:$0xff] %v640
      %657 = vst [vmem:[#allocation3 + $0x10] sm:$0xff] %v641
      %658 = vst [vmem:[#allocation3 + $0x20] sm:$0xff] %v642
      %659 = vst [vmem:[#allocation3 + $0x30] sm:$0xff] %v643
      %660 = vst [vmem:[#allocation3 + $0x40] sm:$0xff] %v644
      %661 = vst [vmem:[#allocation3 + $0x50] sm:$0xff] %v645
      %662 = vst [vmem:[#allocation3 + $0x60] sm:$0xff] %v646
      %663 = vst [vmem:[#allocation3 + $0x70] sm:$0xff] %v647
      %664 = vst [vmem:[#allocation3 + $0x80] sm:$0xff] %v648
      %665 = vst [vmem:[#allocation3 + $0x90] sm:$0xff] %v649
      %666 = vst [vmem:[#allocation3 + $0xa0] sm:$0xff] %v650
      %667 = vst [vmem:[#allocation3 + $0xb0] sm:$0xff] %v651
      %668 = vst [vmem:[#allocation3 + $0xc0] sm:$0xff] %v652
      %669 = vst [vmem:[#allocation3 + $0xd0] sm:$0xff] %v653
      %670 = vst [vmem:[#allocation3 + $0xe0] sm:$0xff] %v654
      %671 = vst [vmem:[#allocation3 + $0xf0] sm:$0xff] %v655
      %v672 = vadd.f32 %v258, %v466
      %v673 = vadd.f32 %v262, %v469
      %v674 = vadd.f32 %v268, %v474
      %v675 = vadd.f32 %v272, %v477
      %v676 = vadd.f32 %v278, %v482
      %v677 = vadd.f32 %v282, %v485
      %v678 = vadd.f32 %v288, %v490
      %v679 = vadd.f32 %v292, %v493
      %v680 = vadd.f32 %v298, %v498
      %v681 = vadd.f32 %v302, %v501
      %v682 = vadd.f32 %v308, %v506
      %v683 = vadd.f32 %v312, %v509
      %v684 = vadd.f32 %v318, %v514
      %v685 = vadd.f32 %v322, %v517
      %v686 = vadd.f32 %v328, %v522
      %v687 = vadd.f32 %v332, %v525
      %v688 = vmul.f32 %v528, %v672
      %v689 = vmul.f32 %v529, %v673
      %v690 = vmul.f32 %v530, %v674
      %v691 = vmul.f32 %v531, %v675
      %v692 = vmul.f32 %v532, %v676
      %v693 = vmul.f32 %v533, %v677
      %v694 = vmul.f32 %v534, %v678
      %v695 = vmul.f32 %v535, %v679
      %v696 = vmul.f32 %v536, %v680
      %v697 = vmul.f32 %v537, %v681
      %v698 = vmul.f32 %v538, %v682
      %v699 = vmul.f32 %v539, %v683
      %v700 = vmul.f32 %v540, %v684
      %v701 = vmul.f32 %v541, %v685
      %v702 = vmul.f32 %v542, %v686
      %v703 = vmul.f32 %v543, %v687
      %v704 = vld [vmem:[#allocation2 + $0x8] sm:$0xff]
      %v705 = vld [vmem:[#allocation2 + $0x18] sm:$0xff]
      %v706 = vld [vmem:[#allocation2 + $0x28] sm:$0xff]
      %v707 = vld [vmem:[#allocation2 + $0x38] sm:$0xff]
      %v708 = vld [vmem:[#allocation2 + $0x48] sm:$0xff]
      %v709 = vld [vmem:[#allocation2 + $0x58] sm:$0xff]
      %v710 = vld [vmem:[#allocation2 + $0x68] sm:$0xff]
      %v711 = vld [vmem:[#allocation2 + $0x78] sm:$0xff]
      %v712 = vld [vmem:[#allocation2 + $0x88] sm:$0xff]
      %v713 = vld [vmem:[#allocation2 + $0x98] sm:$0xff]
      %v714 = vld [vmem:[#allocation2 + $0xa8] sm:$0xff]
      %v715 = vld [vmem:[#allocation2 + $0xb8] sm:$0xff]
      %v716 = vld [vmem:[#allocation2 + $0xc8] sm:$0xff]
      %v717 = vld [vmem:[#allocation2 + $0xd8] sm:$0xff]
      %v718 = vld [vmem:[#allocation2 + $0xe8] sm:$0xff]
      %v719 = vld [vmem:[#allocation2 + $0xf8] sm:$0xff]
      %v720 = vmul.f32 %v704, 2.0
      %v721 = vmul.f32 %v705, 2.0
      %v722 = vmul.f32 %v706, 2.0
      %v723 = vmul.f32 %v707, 2.0
      %v724 = vmul.f32 %v708, 2.0
      %v725 = vmul.f32 %v709, 2.0
      %v726 = vmul.f32 %v710, 2.0
      %v727 = vmul.f32 %v711, 2.0
      %v728 = vmul.f32 %v712, 2.0
      %v729 = vmul.f32 %v713, 2.0
      %v730 = vmul.f32 %v714, 2.0
      %v731 = vmul.f32 %v715, 2.0
      %v732 = vmul.f32 %v716, 2.0
      %v733 = vmul.f32 %v717, 2.0
      %v734 = vmul.f32 %v718, 2.0
      %v735 = vmul.f32 %v719, 2.0
      %v736 = vld [vmem:[#allocation3 + $0x8] sm:$0xff]
      %v737 = vld [vmem:[#allocation3 + $0x18] sm:$0xff]
      %v738 = vld [vmem:[#allocation3 + $0x28] sm:$0xff]
      %v739 = vld [vmem:[#allocation3 + $0x38] sm:$0xff]
      %v740 = vld [vmem:[#allocation3 + $0x48] sm:$0xff]
      %v741 = vld [vmem:[#allocation3 + $0x58] sm:$0xff]
      %v742 = vld [vmem:[#allocation3 + $0x68] sm:$0xff]
      %v743 = vld [vmem:[#allocation3 + $0x78] sm:$0xff]
      %v744 = vld [vmem:[#allocation3 + $0x88] sm:$0xff]
      %v745 = vld [vmem:[#allocation3 + $0x98] sm:$0xff]
      %v746 = vld [vmem:[#allocation3 + $0xa8] sm:$0xff]
      %v747 = vld [vmem:[#allocation3 + $0xb8] sm:$0xff]
      %v748 = vld [vmem:[#allocation3 + $0xc8] sm:$0xff]
      %v749 = vld [vmem:[#allocation3 + $0xd8] sm:$0xff]
      %v750 = vld [vmem:[#allocation3 + $0xe8] sm:$0xff]
      %v751 = vld [vmem:[#allocation3 + $0xf8] sm:$0xff]
      %v752 = vsub.f32 %v720, %v736
      %v753 = vsub.f32 %v721, %v737
      %v754 = vsub.f32 %v722, %v738
      %v755 = vsub.f32 %v723, %v739
      %v756 = vsub.f32 %v724, %v740
      %v757 = vsub.f32 %v725, %v741
      %v758 = vsub.f32 %v726, %v742
      %v759 = vsub.f32 %v727, %v743
      %v760 = vsub.f32 %v728, %v744
      %v761 = vsub.f32 %v729, %v745
      %v762 = vsub.f32 %v730, %v746
      %v763 = vsub.f32 %v731, %v747
      %v764 = vsub.f32 %v732, %v748
      %v765 = vsub.f32 %v733, %v749
      %v766 = vsub.f32 %v734, %v750
      %v767 = vsub.f32 %v735, %v751
      %v768 = vadd.f32 %v752, %v688
      %v769 = vadd.f32 %v753, %v689
      %v770 = vadd.f32 %v754, %v690
      %v771 = vadd.f32 %v755, %v691
      %v772 = vadd.f32 %v756, %v692
      %v773 = vadd.f32 %v757, %v693
      %v774 = vadd.f32 %v758, %v694
      %v775 = vadd.f32 %v759, %v695
      %v776 = vadd.f32 %v760, %v696
      %v777 = vadd.f32 %v761, %v697
      %v778 = vadd.f32 %v762, %v698
      %v779 = vadd.f32 %v763, %v699
      %v780 = vadd.f32 %v764, %v700
      %v781 = vadd.f32 %v765, %v701
      %v782 = vadd.f32 %v766, %v702
      %v783 = vadd.f32 %v767, %v703
      %v784 = vld [vmem:[%s4] sm:$0xff]
      %v785 = vld [vmem:[%s4 + $0x8] sm:$0xff]
      %v786 = vld [vmem:[%s4 + $0x10] sm:$0xff]
      %v787 = vld [vmem:[%s4 + $0x18] sm:$0xff]
      %v788 = vld [vmem:[%s4 + $0x20] sm:$0xff]
      %v789 = vld [vmem:[%s4 + $0x28] sm:$0xff]
      %v790 = vld [vmem:[%s4 + $0x30] sm:$0xff]
      %v791 = vld [vmem:[%s4 + $0x38] sm:$0xff]
      %v792 = vld [vmem:[%s4 + $0x40] sm:$0xff]
      %v793 = vld [vmem:[%s4 + $0x48] sm:$0xff]
      %v794 = vld [vmem:[%s4 + $0x50] sm:$0xff]
      %v795 = vld [vmem:[%s4 + $0x58] sm:$0xff]
      %v796 = vld [vmem:[%s4 + $0x60] sm:$0xff]
      %v797 = vld [vmem:[%s4 + $0x68] sm:$0xff]
      %v798 = vld [vmem:[%s4 + $0x70] sm:$0xff]
      %v799 = vld [vmem:[%s4 + $0x78] sm:$0xff]
      %v800 = vmul.f32 %v784, %v560
      %v801 = vmul.f32 %v785, %v561
      %v802 = vmul.f32 %v786, %v562
      %v803 = vmul.f32 %v787, %v563
      %v804 = vmul.f32 %v788, %v564
      %v805 = vmul.f32 %v789, %v565
      %v806 = vmul.f32 %v790, %v566
      %v807 = vmul.f32 %v791, %v567
      %v808 = vmul.f32 %v792, %v568
      %v809 = vmul.f32 %v793, %v569
      %v810 = vmul.f32 %v794, %v570
      %v811 = vmul.f32 %v795, %v571
      %v812 = vmul.f32 %v796, %v572
      %v813 = vmul.f32 %v797, %v573
      %v814 = vmul.f32 %v798, %v574
      %v815 = vmul.f32 %v799, %v575
      %v816 = vsub.f32 %v768, %v800
      %v817 = vsub.f32 %v769, %v801
      %v818 = vsub.f32 %v770, %v802
      %v819 = vsub.f32 %v771, %v803
      %v820 = vsub.f32 %v772, %v804
      %v821 = vsub.f32 %v773, %v805
      %v822 = vsub.f32 %v774, %v806
      %v823 = vsub.f32 %v775, %v807
      %v824 = vsub.f32 %v776, %v808
      %v825 = vsub.f32 %v777, %v809
      %v826 = vsub.f32 %v778, %v810
      %v827 = vsub.f32 %v779, %v811
      %v828 = vsub.f32 %v780, %v812
      %v829 = vsub.f32 %v781, %v813
      %v830 = vsub.f32 %v782, %v814
      %v831 = vsub.f32 %v783, %v815
      %832 = vst [vmem:[#allocation3 + $0x8] sm:$0xff] %v816
      %833 = vst [vmem:[#allocation3 + $0x18] sm:$0xff] %v817
      %834 = vst [vmem:[#allocation3 + $0x28] sm:$0xff] %v818
      %835 = vst [vmem:[#allocation3 + $0x38] sm:$0xff] %v819
      %836 = vst [vmem:[#allocation3 + $0x48] sm:$0xff] %v820
      %837 = vst [vmem:[#allocation3 + $0x58] sm:$0xff] %v821
      %838 = vst [vmem:[#allocation3 + $0x68] sm:$0xff] %v822
      %839 = vst [vmem:[#allocation3 + $0x78] sm:$0xff] %v823
      %840 = vst [vmem:[#allocation3 + $0x88] sm:$0xff] %v824
      %841 = vst [vmem:[#allocation3 + $0x98] sm:$0xff] %v825
      %842 = vst [vmem:[#allocation3 + $0xa8] sm:$0xff] %v826
      %843 = vst [vmem:[#allocation3 + $0xb8] sm:$0xff] %v827
      %844 = vst [vmem:[#allocation3 + $0xc8] sm:$0xff] %v828
      %845 = vst [vmem:[#allocation3 + $0xd8] sm:$0xff] %v829
      %846 = vst [vmem:[#allocation3 + $0xe8] sm:$0xff] %v830
      %847 = vst [vmem:[#allocation3 + $0xf8] sm:$0xff] %v831
      %s848 = sld [smem:[#allocation5 + %s104]]
      %v849 = vld [vmem:[%s3] sm:$0xff]
      %v850 = vstv %s848
      %v851 = vmul.f32 %v850, %v849
      %v852 = vld [vmem:[#allocation3 + $0x10] sm:$0xff]
      %v853 = vadd.f32 %v852, %v851
      %854 = vst [vmem:[#allocation3 + $0x10] sm:$0xff] %v853
      %v855 = vld [vmem:[#allocation3 + $0x18] sm:$0xff]
      %v856 = vld [vmem:[%s4 + $0x8] sm:$0xff]
      %v857 = vmul.f32 %v856, %v851
      %v858 = vsub.f32 %v855, %v857
      %859 = vst [vmem:[#allocation3 + $0x18] sm:$0xff] %v858
      %s860 = sadd.s32 %s104, 1
      %v861 = vld [vmem:[#allocation3 + $0x1a] ss:$0 sm:$0xff]
      %s862 = sand.u32 %s860, 7
      %s863 = scalar_lea.vmem [#allocation4], %s862
      %864 = vst [vmem:[%s863] sm:$0x1] %v861
      %v865 = vld [vmem:[%s1] sm:$0xf]
      %v866 = vld [vmem:[%s1 + $0x4] sm:$0xf]
      %v867 = vld [vmem:[%s1 + $0x8] sm:$0xf]
      %v868 = vld [vmem:[%s1 + $0xc] sm:$0xf]
      %v869 = vld [vmem:[%s1 + $0x10] sm:$0xf]
      %v870 = vld [vmem:[%s1 + $0x14] sm:$0xf]
      %v871 = vld [vmem:[%s1 + $0x18] sm:$0xf]
      %v872 = vld [vmem:[%s1 + $0x1c] sm:$0xf]
      %v873 = vld [vmem:[%s1 + $0x20] sm:$0xf]
      %v874 = vld [vmem:[%s1 + $0x24] sm:$0xf]
      %v875 = vld [vmem:[%s1 + $0x28] sm:$0xf]
      %v876 = vld [vmem:[%s1 + $0x2c] sm:$0xf]
      %v877 = vld [vmem:[%s1 + $0x30] sm:$0xf]
      %v878 = vld [vmem:[%s1 + $0x34] sm:$0xf]
      %v879 = vld [vmem:[%s1 + $0x38] sm:$0xf]
      %v880 = vld [vmem:[%s1 + $0x3c] sm:$0xf]
      %v881 = vld [vmem:[#allocation3] sm:$0xff]
      %v882 = vld [vmem:[#allocation3 + $0x8] sm:$0xff]
      %v883 = vld [vmem:[#allocation3 + $0x10] sm:$0xff]
      %v884 = vld [vmem:[#allocation3 + $0x18] sm:$0xff]
      %v885 = vld [vmem:[#allocation3 + $0x20] sm:$0xff]
      %v886 = vld [vmem:[#allocation3 + $0x28] sm:$0xff]
      %v887 = vld [vmem:[#allocation3 + $0x30] sm:$0xff]
      %v888 = vld [vmem:[#allocation3 + $0x38] sm:$0xff]
      %v889 = vld [vmem:[#allocation3 + $0x40] sm:$0xff]
      %v890 = vld [vmem:[#allocation3 + $0x48] sm:$0xff]
      %v891 = vld [vmem:[#allocation3 + $0x50] sm:$0xff]
      %v892 = vld [vmem:[#allocation3 + $0x58] sm:$0xff]
      %v893 = vld [vmem:[#allocation3 + $0x60] sm:$0xff]
      %v894 = vld [vmem:[#allocation3 + $0x68] sm:$0xff]
      %v895 = vld [vmem:[#allocation3 + $0x70] sm:$0xff]
      %v896 = vld [vmem:[#allocation3 + $0x78] sm:$0xff]
      %v897 = vld [vmem:[#allocation3 + $0x80] sm:$0xff]
      %v898 = vld [vmem:[#allocation3 + $0x88] sm:$0xff]
      %v899 = vld [vmem:[#allocation3 + $0x90] sm:$0xff]
      %v900 = vld [vmem:[#allocation3 + $0x98] sm:$0xff]
      %v901 = vld [vmem:[#allocation3 + $0xa0] sm:$0xff]
      %v902 = vld [vmem:[#allocation3 + $0xa8] sm:$0xff]
      %v903 = vld [vmem:[#allocation3 + $0xb0] sm:$0xff]
      %v904 = vld [vmem:[#allocation3 + $0xb8] sm:$0xff]
      %v905 = vld [vmem:[#allocation3 + $0xc0] sm:$0xff]
      %v906 = vld [vmem:[#allocation3 + $0xc8] sm:$0xff]
      %v907 = vld [vmem:[#allocation3 + $0xd0] sm:$0xff]
      %v908 = vld [vmem:[#allocation3 + $0xd8] sm:$0xff]
      %v909 = vld [vmem:[#allocation3 + $0xe0] sm:$0xff]
      %v910 = vld [vmem:[#allocation3 + $0xe8] sm:$0xff]
      %v911 = vld [vmem:[#allocation3 + $0xf0] sm:$0xff]
      %v912 = vld [vmem:[#allocation3 + $0xf8] sm:$0xff]
      %v913 = vpack.c.bf16 %v883, %v881
      %v914 = vpack.c.bf16 %v884, %v882
      %v915 = vpack.c.bf16 %v887, %v885
      %v916 = vpack.c.bf16 %v888, %v886
      %v917 = vpack.c.bf16 %v891, %v889
      %v918 = vpack.c.bf16 %v892, %v890
      %v919 = vpack.c.bf16 %v895, %v893
      %v920 = vpack.c.bf16 %v896, %v894
      %v921 = vpack.c.bf16 %v899, %v897
      %v922 = vpack.c.bf16 %v900, %v898
      %v923 = vpack.c.bf16 %v903, %v901
      %v924 = vpack.c.bf16 %v904, %v902
      %v925 = vpack.c.bf16 %v907, %v905
      %v926 = vpack.c.bf16 %v908, %v906
      %v927 = vpack.c.bf16 %v911, %v909
      %v928 = vpack.c.bf16 %v912, %v910
      %v945 = vunpack.c.l.b16 %v865
      %v946 = vunpack.c.l.b16 %v866
      %v947 = vunpack.c.l.b16 %v867
      %v948 = vunpack.c.l.b16 %v868
      %v949 = vunpack.c.l.b16 %v869
      %v950 = vunpack.c.l.b16 %v870
      %v951 = vunpack.c.l.b16 %v871
      %v952 = vunpack.c.l.b16 %v872
      %v953 = vunpack.c.l.b16 %v873
      %v954 = vunpack.c.l.b16 %v874
      %v955 = vunpack.c.l.b16 %v875
      %v956 = vunpack.c.l.b16 %v876
      %v957 = vunpack.c.l.b16 %v877
      %v958 = vunpack.c.l.b16 %v878
      %v959 = vunpack.c.l.b16 %v879
      %v960 = vunpack.c.l.b16 %v880
      %v961 = vpack.c.b16 %v946, %v945
      %v962 = vpack.c.b16 %v948, %v947
      %v963 = vpack.c.b16 %v950, %v949
      %v964 = vpack.c.b16 %v952, %v951
      %v965 = vpack.c.b16 %v954, %v953
      %v966 = vpack.c.b16 %v956, %v955
      %v967 = vpack.c.b16 %v958, %v957
      %v968 = vpack.c.b16 %v960, %v959
      %977 = vmatprep.subr.bf16.mxu0 %v914
      %978 = vmatpush1.bf16.msra.mxu0 %v913
      %979 = vmatprep.subr.bf16.mxu0 %v916
      %980 = vmatpush1.bf16.msra.mxu0 %v915
      %981 = vmatprep.subr.bf16.mxu0 %v918
      %982 = vmatpush1.bf16.msra.mxu0 %v917
      %983 = vmatprep.subr.bf16.mxu0 %v920
      %984 = vmatpush1.bf16.msra.mxu0 %v919
      %985 = vmatprep.subr.bf16.mxu0 %v922
      %986 = vmatpush1.bf16.msra.mxu0 %v921
      %987 = vmatprep.subr.bf16.mxu0 %v924
      %988 = vmatpush1.bf16.msra.mxu0 %v923
      %989 = vmatprep.subr.bf16.mxu0 %v926
      %990 = vmatpush1.bf16.msra.mxu0 %v925
      %991 = vmatprep.subr.bf16.mxu0 %v928
      %992 = vmatpush1.bf16.msra.mxu0 %v927
      %993 = vmatprep.subr.bf16.mxu0 0
      %994 = vmatpush1.bf16.msra.mxu0 0
      %995 = vmatprep.subr.bf16.mxu0 0
      %996 = vmatpush1.bf16.msra.mxu0 0
      %997 = vmatprep.subr.bf16.mxu0 0
      %998 = vmatpush1.bf16.msra.mxu0 0
      %999 = vmatprep.subr.bf16.mxu0 0
      %1000 = vmatpush1.bf16.msra.mxu0 0
      %1001 = vmatprep.subr.bf16.mxu0 0
      %1002 = vmatpush1.bf16.msra.mxu0 0
      %1003 = vmatprep.subr.bf16.mxu0 0
      %1004 = vmatpush1.bf16.msra.mxu0 0
      %1005 = vmatprep.subr.bf16.mxu0 0
      %1006 = vmatpush1.bf16.msra.mxu0 0
      %1007 = vmatprep.subr.bf16.mxu0 0
      %1008 = vmatpush1.bf16.msra.mxu0 0
      %1009 = vmatprep.mubr.bf16.mxu0 0
      %1010 = vmatmul.mubr.bf16.gmra.mrb[0].mxu0 %v961
      %v1011 = vpop.f32.mrb[0].mxu0
      %v1012 = vadd.f32 0.0, %v1011
      %v1013 = vpop.f32.mrb[0].mxu0
      %v1014 = vadd.f32 0.0, %v1013
      %v1015 = vpop.f32.mrb[0].mxu0
      %v1016 = vadd.f32 0.0, %v1015
      %v1017 = vpop.f32.mrb[0].mxu0
      %v1018 = vadd.f32 0.0, %v1017
      %1019 = vmatprep.mubr.bf16.mxu0 0
      %1020 = vmatmul.mubr.bf16.gmra.mrb[0].mxu0 %v962
      %v1021 = vpop.f32.mrb[0].mxu0
      %v1022 = vadd.f32 0.0, %v1021
      %v1023 = vpop.f32.mrb[0].mxu0
      %v1024 = vadd.f32 0.0, %v1023
      %v1025 = vpop.f32.mrb[0].mxu0
      %v1026 = vadd.f32 0.0, %v1025
      %v1027 = vpop.f32.mrb[0].mxu0
      %v1028 = vadd.f32 0.0, %v1027
      %1029 = vmatprep.mubr.bf16.mxu0 0
      %1030 = vmatmul.mubr.bf16.gmra.mrb[0].mxu0 %v963
      %v1031 = vpop.f32.mrb[0].mxu0
      %v1032 = vadd.f32 0.0, %v1031
      %v1033 = vpop.f32.mrb[0].mxu0
      %v1034 = vadd.f32 0.0, %v1033
      %v1035 = vpop.f32.mrb[0].mxu0
      %v1036 = vadd.f32 0.0, %v1035
      %v1037 = vpop.f32.mrb[0].mxu0
      %v1038 = vadd.f32 0.0, %v1037
      %1039 = vmatprep.mubr.bf16.mxu0 0
      %1040 = vmatmul.mubr.bf16.gmra.mrb[0].mxu0 %v964
      %v1041 = vpop.f32.mrb[0].mxu0
      %v1042 = vadd.f32 0.0, %v1041
      %v1043 = vpop.f32.mrb[0].mxu0
      %v1044 = vadd.f32 0.0, %v1043
      %v1045 = vpop.f32.mrb[0].mxu0
      %v1046 = vadd.f32 0.0, %v1045
      %v1047 = vpop.f32.mrb[0].mxu0
      %v1048 = vadd.f32 0.0, %v1047
      %1049 = vmatprep.mubr.bf16.mxu0 0
      %1050 = vmatmul.mubr.bf16.gmra.mrb[0].mxu0 %v965
      %v1051 = vpop.f32.mrb[0].mxu0
      %v1052 = vadd.f32 0.0, %v1051
      %v1053 = vpop.f32.mrb[0].mxu0
      %v1054 = vadd.f32 0.0, %v1053
      %v1055 = vpop.f32.mrb[0].mxu0
      %v1056 = vadd.f32 0.0, %v1055
      %v1057 = vpop.f32.mrb[0].mxu0
      %v1058 = vadd.f32 0.0, %v1057
      %1059 = vmatprep.mubr.bf16.mxu0 0
      %1060 = vmatmul.mubr.bf16.gmra.mrb[0].mxu0 %v966
      %v1061 = vpop.f32.mrb[0].mxu0
      %v1062 = vadd.f32 0.0, %v1061
      %v1063 = vpop.f32.mrb[0].mxu0
      %v1064 = vadd.f32 0.0, %v1063
      %v1065 = vpop.f32.mrb[0].mxu0
      %v1066 = vadd.f32 0.0, %v1065
      %v1067 = vpop.f32.mrb[0].mxu0
      %v1068 = vadd.f32 0.0, %v1067
      %1069 = vmatprep.mubr.bf16.mxu0 0
      %1070 = vmatmul.mubr.bf16.gmra.mrb[0].mxu0 %v967
      %v1071 = vpop.f32.mrb[0].mxu0
      %v1072 = vadd.f32 0.0, %v1071
      %v1073 = vpop.f32.mrb[0].mxu0
      %v1074 = vadd.f32 0.0, %v1073
      %v1075 = vpop.f32.mrb[0].mxu0
      %v1076 = vadd.f32 0.0, %v1075
      %v1077 = vpop.f32.mrb[0].mxu0
      %v1078 = vadd.f32 0.0, %v1077
      %1079 = vmatprep.mubr.bf16.mxu0 0
      %1080 = vmatmul.mubr.bf16.gmra.mrb[0].mxu0 %v968
      %v1081 = vpop.f32.mrb[0].mxu0
      %v1082 = vadd.f32 0.0, %v1081
      %v1083 = vpop.f32.mrb[0].mxu0
      %v1084 = vadd.f32 0.0, %v1083
      %v1085 = vpop.f32.mrb[0].mxu0
      %v1086 = vadd.f32 0.0, %v1085
      %v1087 = vpop.f32.mrb[0].mxu0
      %v1088 = vadd.f32 0.0, %v1087
      %1089 = vdwg.mxu0
      %1090 = vmatprep.subr.bf16.mxu0 0
      %1091 = vmatpush1.bf16.msra.mxu0 %v961
      %1092 = vmatprep.subr.bf16.mxu0 0
      %1093 = vmatpush1.bf16.msra.mxu0 %v962
      %1094 = vmatprep.subr.bf16.mxu0 0
      %1095 = vmatpush1.bf16.msra.mxu0 %v963
      %1096 = vmatprep.subr.bf16.mxu0 0
      %1097 = vmatpush1.bf16.msra.mxu0 %v964
      %1098 = vmatprep.subr.bf16.mxu0 0
      %1099 = vmatpush1.bf16.msra.mxu0 %v965
      %1100 = vmatprep.subr.bf16.mxu0 0
      %1101 = vmatpush1.bf16.msra.mxu0 %v966
      %1102 = vmatprep.subr.bf16.mxu0 0
      %1103 = vmatpush1.bf16.msra.mxu0 %v967
      %1104 = vmatprep.subr.bf16.mxu0 0
      %1105 = vmatpush1.bf16.msra.mxu0 %v968
      %1106 = vmatprep.subr.bf16.mxu0 0
      %1107 = vmatpush1.bf16.msra.mxu0 0
      %1108 = vmatprep.subr.bf16.mxu0 0
      %1109 = vmatpush1.bf16.msra.mxu0 0
      %1110 = vmatprep.subr.bf16.mxu0 0
      %1111 = vmatpush1.bf16.msra.mxu0 0
      %1112 = vmatprep.subr.bf16.mxu0 0
      %1113 = vmatpush1.bf16.msra.mxu0 0
      %1114 = vmatprep.subr.bf16.mxu0 0
      %1115 = vmatpush1.bf16.msra.mxu0 0
      %1116 = vmatprep.subr.bf16.mxu0 0
      %1117 = vmatpush1.bf16.msra.mxu0 0
      %1118 = vmatprep.subr.bf16.mxu0 0
      %1119 = vmatpush1.bf16.msra.mxu0 0
      %1120 = vmatprep.subr.bf16.mxu0 0
      %1121 = vmatpush1.bf16.msra.mxu0 0
      %1122 = vmatprep.mubr.bf16.mxu0 0
      %1123 = vmatmul.mubr.bf16.gmra.mrb[0].mxu0 %v913
      %v1124 = vpop.f32.mrb[0].mxu0
      %v1125 = vadd.f32 0.0, %v1124
      %v1126 = vpop.f32.mrb[0].mxu0
      %v1127 = vpop.f32.mrb[0].mxu0
      %v1128 = vadd.f32 0.0, %v1127
      %v1129 = vpop.f32.mrb[0].mxu0
      %1130 = vmatprep.mubr.bf16.mxu0 0
      %1131 = vmatmul.mubr.bf16.gmra.mrb[0].mxu0 %v915
      %v1132 = vpop.f32.mrb[0].mxu0
      %v1133 = vadd.f32 0.0, %v1132
      %v1134 = vpop.f32.mrb[0].mxu0
      %v1135 = vpop.f32.mrb[0].mxu0
      %v1136 = vadd.f32 0.0, %v1135
      %v1137 = vpop.f32.mrb[0].mxu0
      %1138 = vmatprep.mubr.bf16.mxu0 0
      %1139 = vmatmul.mubr.bf16.gmra.mrb[0].mxu0 %v917
      %v1140 = vpop.f32.mrb[0].mxu0
      %v1141 = vadd.f32 0.0, %v1140
      %v1142 = vpop.f32.mrb[0].mxu0
      %v1143 = vpop.f32.mrb[0].mxu0
      %v1144 = vadd.f32 0.0, %v1143
      %v1145 = vpop.f32.mrb[0].mxu0
      %1146 = vmatprep.mubr.bf16.mxu0 0
      %1147 = vmatmul.mubr.bf16.gmra.mrb[0].mxu0 %v919
      %v1148 = vpop.f32.mrb[0].mxu0
      %v1149 = vadd.f32 0.0, %v1148
      %v1150 = vpop.f32.mrb[0].mxu0
      %v1151 = vpop.f32.mrb[0].mxu0
      %v1152 = vadd.f32 0.0, %v1151
      %v1153 = vpop.f32.mrb[0].mxu0
      %1154 = vmatprep.mubr.bf16.mxu0 0
      %1155 = vmatmul.mubr.bf16.gmra.mrb[0].mxu0 %v921
      %v1156 = vpop.f32.mrb[0].mxu0
      %v1157 = vadd.f32 0.0, %v1156
      %v1158 = vpop.f32.mrb[0].mxu0
      %v1159 = vpop.f32.mrb[0].mxu0
      %v1160 = vadd.f32 0.0, %v1159
      %v1161 = vpop.f32.mrb[0].mxu0
      %1162 = vmatprep.mubr.bf16.mxu0 0
      %1163 = vmatmul.mubr.bf16.gmra.mrb[0].mxu0 %v923
      %v1164 = vpop.f32.mrb[0].mxu0
      %v1165 = vadd.f32 0.0, %v1164
      %v1166 = vpop.f32.mrb[0].mxu0
      %v1167 = vpop.f32.mrb[0].mxu0
      %v1168 = vadd.f32 0.0, %v1167
      %v1169 = vpop.f32.mrb[0].mxu0
      %1170 = vmatprep.mubr.bf16.mxu0 0
      %1171 = vmatmul.mubr.bf16.gmra.mrb[0].mxu0 %v925
      %v1172 = vpop.f32.mrb[0].mxu0
      %v1173 = vadd.f32 0.0, %v1172
      %v1174 = vpop.f32.mrb[0].mxu0
      %v1175 = vpop.f32.mrb[0].mxu0
      %v1176 = vadd.f32 0.0, %v1175
      %v1177 = vpop.f32.mrb[0].mxu0
      %1178 = vmatprep.mubr.bf16.mxu0 0
      %1179 = vmatmul.mubr.bf16.gmra.mrb[0].mxu0 %v927
      %v1180 = vpop.f32.mrb[0].mxu0
      %v1181 = vadd.f32 0.0, %v1180
      %v1182 = vpop.f32.mrb[0].mxu0
      %v1183 = vpop.f32.mrb[0].mxu0
      %v1184 = vadd.f32 0.0, %v1183
      %v1185 = vpop.f32.mrb[0].mxu0
      %1186 = vdwg.mxu0
      %1187 = vmatprep.subr.bf16.mxu0 0
      %1188 = vmatpush1.bf16.msra.mxu0 %v961
      %1189 = vmatprep.subr.bf16.mxu0 0
      %1190 = vmatpush1.bf16.msra.mxu0 %v962
      %1191 = vmatprep.subr.bf16.mxu0 0
      %1192 = vmatpush1.bf16.msra.mxu0 %v963
      %1193 = vmatprep.subr.bf16.mxu0 0
      %1194 = vmatpush1.bf16.msra.mxu0 %v964
      %1195 = vmatprep.subr.bf16.mxu0 0
      %1196 = vmatpush1.bf16.msra.mxu0 %v965
      %1197 = vmatprep.subr.bf16.mxu0 0
      %1198 = vmatpush1.bf16.msra.mxu0 %v966
      %1199 = vmatprep.subr.bf16.mxu0 0
      %1200 = vmatpush1.bf16.msra.mxu0 %v967
      %1201 = vmatprep.subr.bf16.mxu0 0
      %1202 = vmatpush1.bf16.msra.mxu0 %v968
      %1203 = vmatprep.subr.bf16.mxu0 0
      %1204 = vmatpush1.bf16.msra.mxu0 0
      %1205 = vmatprep.subr.bf16.mxu0 0
      %1206 = vmatpush1.bf16.msra.mxu0 0
      %1207 = vmatprep.subr.bf16.mxu0 0
      %1208 = vmatpush1.bf16.msra.mxu0 0
      %1209 = vmatprep.subr.bf16.mxu0 0
      %1210 = vmatpush1.bf16.msra.mxu0 0
      %1211 = vmatprep.subr.bf16.mxu0 0
      %1212 = vmatpush1.bf16.msra.mxu0 0
      %1213 = vmatprep.subr.bf16.mxu0 0
      %1214 = vmatpush1.bf16.msra.mxu0 0
      %1215 = vmatprep.subr.bf16.mxu0 0
      %1216 = vmatpush1.bf16.msra.mxu0 0
      %1217 = vmatprep.subr.bf16.mxu0 0
      %1218 = vmatpush1.bf16.msra.mxu0 0
      %1219 = vmatprep.mubr.bf16.mxu0 0
      %1220 = vmatmul.mubr.bf16.gmra.mrb[0].mxu0 %v914
      %v1221 = vpop.f32.mrb[0].mxu0
      %v1222 = vadd.f32 0.0, %v1221
      %v1223 = vpop.f32.mrb[0].mxu0
      %v1224 = vpop.f32.mrb[0].mxu0
      %v1225 = vadd.f32 0.0, %v1224
      %v1226 = vpop.f32.mrb[0].mxu0
      %1227 = vmatprep.mubr.bf16.mxu0 0
      %1228 = vmatmul.mubr.bf16.gmra.mrb[0].mxu0 %v916
      %v1229 = vpop.f32.mrb[0].mxu0
      %v1230 = vadd.f32 0.0, %v1229
      %v1231 = vpop.f32.mrb[0].mxu0
      %v1232 = vpop.f32.mrb[0].mxu0
      %v1233 = vadd.f32 0.0, %v1232
      %v1234 = vpop.f32.mrb[0].mxu0
      %1235 = vmatprep.mubr.bf16.mxu0 0
      %1236 = vmatmul.mubr.bf16.gmra.mrb[0].mxu0 %v918
      %v1237 = vpop.f32.mrb[0].mxu0
      %v1238 = vadd.f32 0.0, %v1237
      %v1239 = vpop.f32.mrb[0].mxu0
      %v1240 = vpop.f32.mrb[0].mxu0
      %v1241 = vadd.f32 0.0, %v1240
      %v1242 = vpop.f32.mrb[0].mxu0
      %1243 = vmatprep.mubr.bf16.mxu0 0
      %1244 = vmatmul.mubr.bf16.gmra.mrb[0].mxu0 %v920
      %v1245 = vpop.f32.mrb[0].mxu0
      %v1246 = vadd.f32 0.0, %v1245
      %v1247 = vpop.f32.mrb[0].mxu0
      %v1248 = vpop.f32.mrb[0].mxu0
      %v1249 = vadd.f32 0.0, %v1248
      %v1250 = vpop.f32.mrb[0].mxu0
      %1251 = vmatprep.mubr.bf16.mxu0 0
      %1252 = vmatmul.mubr.bf16.gmra.mrb[0].mxu0 %v922
      %v1253 = vpop.f32.mrb[0].mxu0
      %v1254 = vadd.f32 0.0, %v1253
      %v1255 = vpop.f32.mrb[0].mxu0
      %v1256 = vpop.f32.mrb[0].mxu0
      %v1257 = vadd.f32 0.0, %v1256
      %v1258 = vpop.f32.mrb[0].mxu0
      %1259 = vmatprep.mubr.bf16.mxu0 0
      %1260 = vmatmul.mubr.bf16.gmra.mrb[0].mxu0 %v924
      %v1261 = vpop.f32.mrb[0].mxu0
      %v1262 = vadd.f32 0.0, %v1261
      %v1263 = vpop.f32.mrb[0].mxu0
      %v1264 = vpop.f32.mrb[0].mxu0
      %v1265 = vadd.f32 0.0, %v1264
      %v1266 = vpop.f32.mrb[0].mxu0
      %1267 = vmatprep.mubr.bf16.mxu0 0
      %1268 = vmatmul.mubr.bf16.gmra.mrb[0].mxu0 %v926
      %v1269 = vpop.f32.mrb[0].mxu0
      %v1270 = vadd.f32 0.0, %v1269
      %v1271 = vpop.f32.mrb[0].mxu0
      %v1272 = vpop.f32.mrb[0].mxu0
      %v1273 = vadd.f32 0.0, %v1272
      %v1274 = vpop.f32.mrb[0].mxu0
      %1275 = vmatprep.mubr.bf16.mxu0 0
      %1276 = vmatmul.mubr.bf16.gmra.mrb[0].mxu0 %v928
      %v1277 = vpop.f32.mrb[0].mxu0
      %v1278 = vadd.f32 0.0, %v1277
      %v1279 = vpop.f32.mrb[0].mxu0
      %v1280 = vpop.f32.mrb[0].mxu0
      %v1281 = vadd.f32 0.0, %v1280
      %v1282 = vpop.f32.mrb[0].mxu0
      %1283 = vdwg.mxu0
      %v1284 = vld [vmem:[%s2] sm:$0xff]
      %v1285 = vld [vmem:[%s2 + $0x8] sm:$0xff]
      %v1286 = vld [vmem:[%s2 + $0x10] sm:$0xff]
      %v1287 = vld [vmem:[%s2 + $0x18] sm:$0xff]
      %v1288 = vld [vmem:[%s2 + $0x20] sm:$0xff]
      %v1289 = vld [vmem:[%s2 + $0x28] sm:$0xff]
      %v1290 = vld [vmem:[%s2 + $0x30] sm:$0xff]
      %v1291 = vld [vmem:[%s2 + $0x38] sm:$0xff]
      %v1292 = vld [vmem:[%s2 + $0x40] sm:$0xff]
      %v1293 = vld [vmem:[%s2 + $0x48] sm:$0xff]
      %v1294 = vld [vmem:[%s2 + $0x50] sm:$0xff]
      %v1295 = vld [vmem:[%s2 + $0x58] sm:$0xff]
      %v1296 = vld [vmem:[%s2 + $0x60] sm:$0xff]
      %v1297 = vld [vmem:[%s2 + $0x68] sm:$0xff]
      %v1298 = vld [vmem:[%s2 + $0x70] sm:$0xff]
      %v1299 = vld [vmem:[%s2 + $0x78] sm:$0xff]
      %v1300 = vadd.f32 %v1012, %v1125
      %v1301 = vadd.f32 %v1016, %v1128
      %v1302 = vadd.f32 %v1022, %v1133
      %v1303 = vadd.f32 %v1026, %v1136
      %v1304 = vadd.f32 %v1032, %v1141
      %v1305 = vadd.f32 %v1036, %v1144
      %v1306 = vadd.f32 %v1042, %v1149
      %v1307 = vadd.f32 %v1046, %v1152
      %v1308 = vadd.f32 %v1052, %v1157
      %v1309 = vadd.f32 %v1056, %v1160
      %v1310 = vadd.f32 %v1062, %v1165
      %v1311 = vadd.f32 %v1066, %v1168
      %v1312 = vadd.f32 %v1072, %v1173
      %v1313 = vadd.f32 %v1076, %v1176
      %v1314 = vadd.f32 %v1082, %v1181
      %v1315 = vadd.f32 %v1086, %v1184
      %v1316 = vmul.f32 %v1284, %v1300
      %v1317 = vmul.f32 %v1285, %v1301
      %v1318 = vmul.f32 %v1286, %v1302
      %v1319 = vmul.f32 %v1287, %v1303
      %v1320 = vmul.f32 %v1288, %v1304
      %v1321 = vmul.f32 %v1289, %v1305
      %v1322 = vmul.f32 %v1290, %v1306
      %v1323 = vmul.f32 %v1291, %v1307
      %v1324 = vmul.f32 %v1292, %v1308
      %v1325 = vmul.f32 %v1293, %v1309
      %v1326 = vmul.f32 %v1294, %v1310
      %v1327 = vmul.f32 %v1295, %v1311
      %v1328 = vmul.f32 %v1296, %v1312
      %v1329 = vmul.f32 %v1297, %v1313
      %v1330 = vmul.f32 %v1298, %v1314
      %v1331 = vmul.f32 %v1299, %v1315
      %v1332 = vld [vmem:[#allocation3] sm:$0xff]
      %v1333 = vld [vmem:[#allocation3 + $0x10] sm:$0xff]
      %v1334 = vld [vmem:[#allocation3 + $0x20] sm:$0xff]
      %v1335 = vld [vmem:[#allocation3 + $0x30] sm:$0xff]
      %v1336 = vld [vmem:[#allocation3 + $0x40] sm:$0xff]
      %v1337 = vld [vmem:[#allocation3 + $0x50] sm:$0xff]
      %v1338 = vld [vmem:[#allocation3 + $0x60] sm:$0xff]
      %v1339 = vld [vmem:[#allocation3 + $0x70] sm:$0xff]
      %v1340 = vld [vmem:[#allocation3 + $0x80] sm:$0xff]
      %v1341 = vld [vmem:[#allocation3 + $0x90] sm:$0xff]
      %v1342 = vld [vmem:[#allocation3 + $0xa0] sm:$0xff]
      %v1343 = vld [vmem:[#allocation3 + $0xb0] sm:$0xff]
      %v1344 = vld [vmem:[#allocation3 + $0xc0] sm:$0xff]
      %v1345 = vld [vmem:[#allocation3 + $0xd0] sm:$0xff]
      %v1346 = vld [vmem:[#allocation3 + $0xe0] sm:$0xff]
      %v1347 = vld [vmem:[#allocation3 + $0xf0] sm:$0xff]
      %v1348 = vmul.f32 %v1332, 2.0
      %v1349 = vmul.f32 %v1333, 2.0
      %v1350 = vmul.f32 %v1334, 2.0
      %v1351 = vmul.f32 %v1335, 2.0
      %v1352 = vmul.f32 %v1336, 2.0
      %v1353 = vmul.f32 %v1337, 2.0
      %v1354 = vmul.f32 %v1338, 2.0
      %v1355 = vmul.f32 %v1339, 2.0
      %v1356 = vmul.f32 %v1340, 2.0
      %v1357 = vmul.f32 %v1341, 2.0
      %v1358 = vmul.f32 %v1342, 2.0
      %v1359 = vmul.f32 %v1343, 2.0
      %v1360 = vmul.f32 %v1344, 2.0
      %v1361 = vmul.f32 %v1345, 2.0
      %v1362 = vmul.f32 %v1346, 2.0
      %v1363 = vmul.f32 %v1347, 2.0
      %v1364 = vld [vmem:[#allocation2] sm:$0xff]
      %v1365 = vld [vmem:[#allocation2 + $0x10] sm:$0xff]
      %v1366 = vld [vmem:[#allocation2 + $0x20] sm:$0xff]
      %v1367 = vld [vmem:[#allocation2 + $0x30] sm:$0xff]
      %v1368 = vld [vmem:[#allocation2 + $0x40] sm:$0xff]
      %v1369 = vld [vmem:[#allocation2 + $0x50] sm:$0xff]
      %v1370 = vld [vmem:[#allocation2 + $0x60] sm:$0xff]
      %v1371 = vld [vmem:[#allocation2 + $0x70] sm:$0xff]
      %v1372 = vld [vmem:[#allocation2 + $0x80] sm:$0xff]
      %v1373 = vld [vmem:[#allocation2 + $0x90] sm:$0xff]
      %v1374 = vld [vmem:[#allocation2 + $0xa0] sm:$0xff]
      %v1375 = vld [vmem:[#allocation2 + $0xb0] sm:$0xff]
      %v1376 = vld [vmem:[#allocation2 + $0xc0] sm:$0xff]
      %v1377 = vld [vmem:[#allocation2 + $0xd0] sm:$0xff]
      %v1378 = vld [vmem:[#allocation2 + $0xe0] sm:$0xff]
      %v1379 = vld [vmem:[#allocation2 + $0xf0] sm:$0xff]
      %v1380 = vsub.f32 %v1348, %v1364
      %v1381 = vsub.f32 %v1349, %v1365
      %v1382 = vsub.f32 %v1350, %v1366
      %v1383 = vsub.f32 %v1351, %v1367
      %v1384 = vsub.f32 %v1352, %v1368
      %v1385 = vsub.f32 %v1353, %v1369
      %v1386 = vsub.f32 %v1354, %v1370
      %v1387 = vsub.f32 %v1355, %v1371
      %v1388 = vsub.f32 %v1356, %v1372
      %v1389 = vsub.f32 %v1357, %v1373
      %v1390 = vsub.f32 %v1358, %v1374
      %v1391 = vsub.f32 %v1359, %v1375
      %v1392 = vsub.f32 %v1360, %v1376
      %v1393 = vsub.f32 %v1361, %v1377
      %v1394 = vsub.f32 %v1362, %v1378
      %v1395 = vsub.f32 %v1363, %v1379
      %v1396 = vadd.f32 %v1380, %v1316
      %v1397 = vadd.f32 %v1381, %v1317
      %v1398 = vadd.f32 %v1382, %v1318
      %v1399 = vadd.f32 %v1383, %v1319
      %v1400 = vadd.f32 %v1384, %v1320
      %v1401 = vadd.f32 %v1385, %v1321
      %v1402 = vadd.f32 %v1386, %v1322
      %v1403 = vadd.f32 %v1387, %v1323
      %v1404 = vadd.f32 %v1388, %v1324
      %v1405 = vadd.f32 %v1389, %v1325
      %v1406 = vadd.f32 %v1390, %v1326
      %v1407 = vadd.f32 %v1391, %v1327
      %v1408 = vadd.f32 %v1392, %v1328
      %v1409 = vadd.f32 %v1393, %v1329
      %v1410 = vadd.f32 %v1394, %v1330
      %v1411 = vadd.f32 %v1395, %v1331
      %1412 = vst [vmem:[#allocation2] sm:$0xff] %v1396
      %1413 = vst [vmem:[#allocation2 + $0x10] sm:$0xff] %v1397
      %1414 = vst [vmem:[#allocation2 + $0x20] sm:$0xff] %v1398
      %1415 = vst [vmem:[#allocation2 + $0x30] sm:$0xff] %v1399
      %1416 = vst [vmem:[#allocation2 + $0x40] sm:$0xff] %v1400
      %1417 = vst [vmem:[#allocation2 + $0x50] sm:$0xff] %v1401
      %1418 = vst [vmem:[#allocation2 + $0x60] sm:$0xff] %v1402
      %1419 = vst [vmem:[#allocation2 + $0x70] sm:$0xff] %v1403
      %1420 = vst [vmem:[#allocation2 + $0x80] sm:$0xff] %v1404
      %1421 = vst [vmem:[#allocation2 + $0x90] sm:$0xff] %v1405
      %1422 = vst [vmem:[#allocation2 + $0xa0] sm:$0xff] %v1406
      %1423 = vst [vmem:[#allocation2 + $0xb0] sm:$0xff] %v1407
      %1424 = vst [vmem:[#allocation2 + $0xc0] sm:$0xff] %v1408
      %1425 = vst [vmem:[#allocation2 + $0xd0] sm:$0xff] %v1409
      %1426 = vst [vmem:[#allocation2 + $0xe0] sm:$0xff] %v1410
      %1427 = vst [vmem:[#allocation2 + $0xf0] sm:$0xff] %v1411
      %v1428 = vadd.f32 %v1014, %v1222
      %v1429 = vadd.f32 %v1018, %v1225
      %v1430 = vadd.f32 %v1024, %v1230
      %v1431 = vadd.f32 %v1028, %v1233
      %v1432 = vadd.f32 %v1034, %v1238
      %v1433 = vadd.f32 %v1038, %v1241
      %v1434 = vadd.f32 %v1044, %v1246
      %v1435 = vadd.f32 %v1048, %v1249
      %v1436 = vadd.f32 %v1054, %v1254
      %v1437 = vadd.f32 %v1058, %v1257
      %v1438 = vadd.f32 %v1064, %v1262
      %v1439 = vadd.f32 %v1068, %v1265
      %v1440 = vadd.f32 %v1074, %v1270
      %v1441 = vadd.f32 %v1078, %v1273
      %v1442 = vadd.f32 %v1084, %v1278
      %v1443 = vadd.f32 %v1088, %v1281
      %v1444 = vmul.f32 %v1284, %v1428
      %v1445 = vmul.f32 %v1285, %v1429
      %v1446 = vmul.f32 %v1286, %v1430
      %v1447 = vmul.f32 %v1287, %v1431
      %v1448 = vmul.f32 %v1288, %v1432
      %v1449 = vmul.f32 %v1289, %v1433
      %v1450 = vmul.f32 %v1290, %v1434
      %v1451 = vmul.f32 %v1291, %v1435
      %v1452 = vmul.f32 %v1292, %v1436
      %v1453 = vmul.f32 %v1293, %v1437
      %v1454 = vmul.f32 %v1294, %v1438
      %v1455 = vmul.f32 %v1295, %v1439
      %v1456 = vmul.f32 %v1296, %v1440
      %v1457 = vmul.f32 %v1297, %v1441
      %v1458 = vmul.f32 %v1298, %v1442
      %v1459 = vmul.f32 %v1299, %v1443
      %v1460 = vld [vmem:[#allocation3 + $0x8] sm:$0xff]
      %v1461 = vld [vmem:[#allocation3 + $0x18] sm:$0xff]
      %v1462 = vld [vmem:[#allocation3 + $0x28] sm:$0xff]
      %v1463 = vld [vmem:[#allocation3 + $0x38] sm:$0xff]
      %v1464 = vld [vmem:[#allocation3 + $0x48] sm:$0xff]
      %v1465 = vld [vmem:[#allocation3 + $0x58] sm:$0xff]
      %v1466 = vld [vmem:[#allocation3 + $0x68] sm:$0xff]
      %v1467 = vld [vmem:[#allocation3 + $0x78] sm:$0xff]
      %v1468 = vld [vmem:[#allocation3 + $0x88] sm:$0xff]
      %v1469 = vld [vmem:[#allocation3 + $0x98] sm:$0xff]
      %v1470 = vld [vmem:[#allocation3 + $0xa8] sm:$0xff]
      %v1471 = vld [vmem:[#allocation3 + $0xb8] sm:$0xff]
      %v1472 = vld [vmem:[#allocation3 + $0xc8] sm:$0xff]
      %v1473 = vld [vmem:[#allocation3 + $0xd8] sm:$0xff]
      %v1474 = vld [vmem:[#allocation3 + $0xe8] sm:$0xff]
      %v1475 = vld [vmem:[#allocation3 + $0xf8] sm:$0xff]
      %v1476 = vmul.f32 %v1460, 2.0
      %v1477 = vmul.f32 %v1461, 2.0
      %v1478 = vmul.f32 %v1462, 2.0
      %v1479 = vmul.f32 %v1463, 2.0
      %v1480 = vmul.f32 %v1464, 2.0
      %v1481 = vmul.f32 %v1465, 2.0
      %v1482 = vmul.f32 %v1466, 2.0
      %v1483 = vmul.f32 %v1467, 2.0
      %v1484 = vmul.f32 %v1468, 2.0
      %v1485 = vmul.f32 %v1469, 2.0
      %v1486 = vmul.f32 %v1470, 2.0
      %v1487 = vmul.f32 %v1471, 2.0
      %v1488 = vmul.f32 %v1472, 2.0
      %v1489 = vmul.f32 %v1473, 2.0
      %v1490 = vmul.f32 %v1474, 2.0
      %v1491 = vmul.f32 %v1475, 2.0
      %v1492 = vld [vmem:[#allocation2 + $0x8] sm:$0xff]
      %v1493 = vld [vmem:[#allocation2 + $0x18] sm:$0xff]
      %v1494 = vld [vmem:[#allocation2 + $0x28] sm:$0xff]
      %v1495 = vld [vmem:[#allocation2 + $0x38] sm:$0xff]
      %v1496 = vld [vmem:[#allocation2 + $0x48] sm:$0xff]
      %v1497 = vld [vmem:[#allocation2 + $0x58] sm:$0xff]
      %v1498 = vld [vmem:[#allocation2 + $0x68] sm:$0xff]
      %v1499 = vld [vmem:[#allocation2 + $0x78] sm:$0xff]
      %v1500 = vld [vmem:[#allocation2 + $0x88] sm:$0xff]
      %v1501 = vld [vmem:[#allocation2 + $0x98] sm:$0xff]
      %v1502 = vld [vmem:[#allocation2 + $0xa8] sm:$0xff]
      %v1503 = vld [vmem:[#allocation2 + $0xb8] sm:$0xff]
      %v1504 = vld [vmem:[#allocation2 + $0xc8] sm:$0xff]
      %v1505 = vld [vmem:[#allocation2 + $0xd8] sm:$0xff]
      %v1506 = vld [vmem:[#allocation2 + $0xe8] sm:$0xff]
      %v1507 = vld [vmem:[#allocation2 + $0xf8] sm:$0xff]
      %v1508 = vsub.f32 %v1476, %v1492
      %v1509 = vsub.f32 %v1477, %v1493
      %v1510 = vsub.f32 %v1478, %v1494
      %v1511 = vsub.f32 %v1479, %v1495
      %v1512 = vsub.f32 %v1480, %v1496
      %v1513 = vsub.f32 %v1481, %v1497
      %v1514 = vsub.f32 %v1482, %v1498
      %v1515 = vsub.f32 %v1483, %v1499
      %v1516 = vsub.f32 %v1484, %v1500
      %v1517 = vsub.f32 %v1485, %v1501
      %v1518 = vsub.f32 %v1486, %v1502
      %v1519 = vsub.f32 %v1487, %v1503
      %v1520 = vsub.f32 %v1488, %v1504
      %v1521 = vsub.f32 %v1489, %v1505
      %v1522 = vsub.f32 %v1490, %v1506
      %v1523 = vsub.f32 %v1491, %v1507
      %v1524 = vadd.f32 %v1508, %v1444
      %v1525 = vadd.f32 %v1509, %v1445
      %v1526 = vadd.f32 %v1510, %v1446
      %v1527 = vadd.f32 %v1511, %v1447
      %v1528 = vadd.f32 %v1512, %v1448
      %v1529 = vadd.f32 %v1513, %v1449
      %v1530 = vadd.f32 %v1514, %v1450
      %v1531 = vadd.f32 %v1515, %v1451
      %v1532 = vadd.f32 %v1516, %v1452
      %v1533 = vadd.f32 %v1517, %v1453
      %v1534 = vadd.f32 %v1518, %v1454
      %v1535 = vadd.f32 %v1519, %v1455
      %v1536 = vadd.f32 %v1520, %v1456
      %v1537 = vadd.f32 %v1521, %v1457
      %v1538 = vadd.f32 %v1522, %v1458
      %v1539 = vadd.f32 %v1523, %v1459
      %v1540 = vld [vmem:[%s4] sm:$0xff]
      %v1541 = vld [vmem:[%s4 + $0x8] sm:$0xff]
      %v1542 = vld [vmem:[%s4 + $0x10] sm:$0xff]
      %v1543 = vld [vmem:[%s4 + $0x18] sm:$0xff]
      %v1544 = vld [vmem:[%s4 + $0x20] sm:$0xff]
      %v1545 = vld [vmem:[%s4 + $0x28] sm:$0xff]
      %v1546 = vld [vmem:[%s4 + $0x30] sm:$0xff]
      %v1547 = vld [vmem:[%s4 + $0x38] sm:$0xff]
      %v1548 = vld [vmem:[%s4 + $0x40] sm:$0xff]
      %v1549 = vld [vmem:[%s4 + $0x48] sm:$0xff]
      %v1550 = vld [vmem:[%s4 + $0x50] sm:$0xff]
      %v1551 = vld [vmem:[%s4 + $0x58] sm:$0xff]
      %v1552 = vld [vmem:[%s4 + $0x60] sm:$0xff]
      %v1553 = vld [vmem:[%s4 + $0x68] sm:$0xff]
      %v1554 = vld [vmem:[%s4 + $0x70] sm:$0xff]
      %v1555 = vld [vmem:[%s4 + $0x78] sm:$0xff]
      %v1556 = vmul.f32 %v1540, %v1316
      %v1557 = vmul.f32 %v1541, %v1317
      %v1558 = vmul.f32 %v1542, %v1318
      %v1559 = vmul.f32 %v1543, %v1319
      %v1560 = vmul.f32 %v1544, %v1320
      %v1561 = vmul.f32 %v1545, %v1321
      %v1562 = vmul.f32 %v1546, %v1322
      %v1563 = vmul.f32 %v1547, %v1323
      %v1564 = vmul.f32 %v1548, %v1324
      %v1565 = vmul.f32 %v1549, %v1325
      %v1566 = vmul.f32 %v1550, %v1326
      %v1567 = vmul.f32 %v1551, %v1327
      %v1568 = vmul.f32 %v1552, %v1328
      %v1569 = vmul.f32 %v1553, %v1329
      %v1570 = vmul.f32 %v1554, %v1330
      %v1571 = vmul.f32 %v1555, %v1331
      %v1572 = vsub.f32 %v1524, %v1556
      %v1573 = vsub.f32 %v1525, %v1557
      %v1574 = vsub.f32 %v1526, %v1558
      %v1575 = vsub.f32 %v1527, %v1559
      %v1576 = vsub.f32 %v1528, %v1560
      %v1577 = vsub.f32 %v1529, %v1561
      %v1578 = vsub.f32 %v1530, %v1562
      %v1579 = vsub.f32 %v1531, %v1563
      %v1580 = vsub.f32 %v1532, %v1564
      %v1581 = vsub.f32 %v1533, %v1565
      %v1582 = vsub.f32 %v1534, %v1566
      %v1583 = vsub.f32 %v1535, %v1567
      %v1584 = vsub.f32 %v1536, %v1568
      %v1585 = vsub.f32 %v1537, %v1569
      %v1586 = vsub.f32 %v1538, %v1570
      %v1587 = vsub.f32 %v1539, %v1571
      %1588 = vst [vmem:[#allocation2 + $0x8] sm:$0xff] %v1572
      %1589 = vst [vmem:[#allocation2 + $0x18] sm:$0xff] %v1573
      %1590 = vst [vmem:[#allocation2 + $0x28] sm:$0xff] %v1574
      %1591 = vst [vmem:[#allocation2 + $0x38] sm:$0xff] %v1575
      %1592 = vst [vmem:[#allocation2 + $0x48] sm:$0xff] %v1576
      %1593 = vst [vmem:[#allocation2 + $0x58] sm:$0xff] %v1577
      %1594 = vst [vmem:[#allocation2 + $0x68] sm:$0xff] %v1578
      %1595 = vst [vmem:[#allocation2 + $0x78] sm:$0xff] %v1579
      %1596 = vst [vmem:[#allocation2 + $0x88] sm:$0xff] %v1580
      %1597 = vst [vmem:[#allocation2 + $0x98] sm:$0xff] %v1581
      %1598 = vst [vmem:[#allocation2 + $0xa8] sm:$0xff] %v1582
      %1599 = vst [vmem:[#allocation2 + $0xb8] sm:$0xff] %v1583
      %1600 = vst [vmem:[#allocation2 + $0xc8] sm:$0xff] %v1584
      %1601 = vst [vmem:[#allocation2 + $0xd8] sm:$0xff] %v1585
      %1602 = vst [vmem:[#allocation2 + $0xe8] sm:$0xff] %v1586
      %1603 = vst [vmem:[#allocation2 + $0xf8] sm:$0xff] %v1587
      %s1604 = sld [smem:[#allocation5 + %s860]]
      %v1605 = vld [vmem:[%s3] sm:$0xff]
      %v1606 = vstv %s1604
      %v1607 = vmul.f32 %v1606, %v1605
      %v1608 = vld [vmem:[#allocation2 + $0x10] sm:$0xff]
      %v1609 = vadd.f32 %v1608, %v1607
      %1610 = vst [vmem:[#allocation2 + $0x10] sm:$0xff] %v1609
      %v1611 = vld [vmem:[#allocation2 + $0x18] sm:$0xff]
      %v1612 = vld [vmem:[%s4 + $0x8] sm:$0xff]
      %v1613 = vmul.f32 %v1612, %v1607
      %v1614 = vsub.f32 %v1611, %v1613
      %1615 = vst [vmem:[#allocation2 + $0x18] sm:$0xff] %v1614
      %s1616 = sand.u32 %s99, 3
      %p1617 = scmp.eq.s32.totalorder %s1616, 3
      // Predicated region
      $region33: #{forward_born_layer.1} parent=29 // pred_check
        %p1618 = pneg %p1617
      $region34: #{forward_born_layer.1} parent=29 // pred_check_branch
        %1620 = sbr.rel (%p1618) target = $region36
      $region35: #{forward_born_layer.1} parent=29 // pred_region
        %s1621 = ssub.s32 %s104, 6
        %v1622 = vld [vmem:[#allocation4] sm:$0xff]
        %s1623 = scalar_lea.vmem %s5, %s1621
        %1624 = vst [vmem:[%s1623] sm:$0xff] %v1622
      $region36: #{forward_born_layer.1} parent=29 // pred_fallthru
        _
    $region30: #{forward_born_layer.1} parent=1 // loop_footer
      %s103 = sadd.s32 1, %s99
    $region31: #{forward_born_layer.1} parent=1 // loop_footer_branch
      %98 = sbr.rel target = $region27
    $region32: #{forward_born_layer.1} parent=1 // loop_exit
      _
    // Predicated region
    $region37: #{forward_born_layer.1} parent=1 // pred_check
      _
    $region38: #{forward_born_layer.1} parent=1 // pred_check_branch
      %1626 = sbr.rel (0) target = $region40
    $region39: #{forward_born_layer.1} parent=1 // pred_region
      _
    $region40: #{forward_born_layer.1} parent=1 // pred_fallthru
      _
    // Predicated region
    $region41: #{forward_born_layer.1} parent=1 // pred_check
      _
    $region42: #{forward_born_layer.1} parent=1 // pred_check_branch
      %1628 = sbr.rel (0) target = $region44
    $region43: #{forward_born_layer.1} parent=1 // pred_region
      _
    $region44: #{forward_born_layer.1} parent=1 // pred_fallthru
      _
    %1629 = vsyncpa [#allocation6], 1

</llo_original>
